<compile_context>
chip_gen: v7x
topology: tpu7x:2x2x1
jax: 0.10.0
libtpu: 0.0.40
codegen_flags: <defaults>
</compile_context>

<pallas_src>
import jax
import jax.numpy as jnp
from jax import lax
from jax.experimental import pallas as pl
from jax.experimental.pallas import tpu as pltpu

# ---- static problem sizes (list lengths are compile-time constants) ----
N = 8          # batch
D = 128        # feature dim (lane aligned)
C = 16         # number of classes
M_SHARED = 3   # len(Shared_list)
MI, MJ = 2, 3  # Mutual_list is an MI x MJ nested list (flattened to MI*MJ)
K_SPEC = 3     # len(Spec_list) == len(Relation_list)
N_TILES = M_SHARED + MI * MJ + 2 * K_SPEC   # 15 tiles in the merged stack

PD_EPS = 1e-6     # F.pairwise_distance eps (added elementwise before the norm)
NORM_EPS = 1e-12  # F.normalize eps (clamp_min on the row norm)

# static offsets into the merged (N_TILES, N, D) stack
_SHARED0 = 0
_MUTUAL0 = M_SHARED
_SPEC0 = M_SHARED + MI * MJ
_REL0 = _SPEC0 + K_SPEC


def _center_normalize(x):
    """x - x.mean() (global mean), then F.normalize(p=2, dim=1)."""
    x = x - jnp.mean(x)
    ss = jnp.sum(x * x, axis=1, keepdims=True)                 # (N, 1)
    # 1 / max(sqrt(ss), eps) == rsqrt(max(ss, eps^2))  -> EUP slot, no VALU divide
    inv = lax.rsqrt(jnp.maximum(ss, NORM_EPS * NORM_EPS))
    return x * inv


def _ortho_cost_normed(a, b):
    """orthogonal_loss tail for already centered+normalized (N, D) a, b.

    With corr = a^T b (D x D):
      mean(corr @ corr) = <colsum(corr), rowsum(corr)> / D^2
        colsum(corr)[q] = sum_n (sum_p a[n,p]) * b[n,q]
        rowsum(corr)[q] = sum_n a[n,q] * (sum_r b[n,r])
    i.e. two VPU/XLU reductions and one length-D dot — no MXU work.
    """
    sa = jnp.sum(a, axis=1, keepdims=True)                     # (N, 1)
    sb = jnp.sum(b, axis=1, keepdims=True)                     # (N, 1)
    u = jnp.sum(sa * b, axis=0, keepdims=True)                 # (1, D)
    v = jnp.sum(sb * a, axis=0, keepdims=True)                 # (1, D)
    cost = jnp.sum(u * v) * (1.0 / (D * D))
    return jnp.maximum(cost, 0.0)                              # F.relu


def network_loss_kernel(feat_ref,     # (N_TILES, N, D) f32 VMEM  (merged stack)
                        logits_ref,   # (N, C) f32 VMEM
                        tgt_ref,      # (N, 1) int32 VMEM
                        out_ref):     # (1, 1) f32 SMEM
    # ---- hoist shared tiles: each (8,128) tile is loaded from VMEM once ----
    shared = [feat_ref[_SHARED0 + i] for i in range(M_SHARED)]

    # ---- contrastive loss over all pairs of Shared_list ----
    # mean(pairwise_distance(a,b)^2) == mean(sum((a - b + eps)^2, axis=1)); relu redundant.
    loss_cont = jnp.float32(0.0)
    for i in range(M_SHARED - 1):
        for j in range(i + 1, M_SHARED):
            diff = shared[i] - shared[j] + PD_EPS
            d2 = jnp.sum(diff * diff, axis=1, keepdims=True)   # (N, 1)
            loss_cont = loss_cont + jnp.mean(d2)

    # ---- Shared_temp = elementwise mean of Shared_list; normalize ONCE ----
    shared_temp = shared[0]
    for i in range(1, M_SHARED):
        shared_temp = shared_temp + shared[i]
    shared_norm = _center_normalize(shared_temp * (1.0 / M_SHARED))

    # ---- orthogonal loss: Shared_temp vs every Mutual_list[i][j] ----
    loss_ortho = jnp.float32(0.0)
    for k in range(MI * MJ):
        mut = _center_normalize(feat_ref[_MUTUAL0 + k])
        loss_ortho = loss_ortho + _ortho_cost_normed(shared_norm, mut)

    # ---- spec loss: Spec_list[i] vs Relation_list[i] ----
    loss_spec = jnp.float32(0.0)
    for k in range(K_SPEC):
        a = _center_normalize(feat_ref[_SPEC0 + k])
        b = _center_normalize(feat_ref[_REL0 + k])
        loss_spec = loss_spec + _ortho_cost_normed(a, b)

    # ---- cross entropy (integer targets, mean reduction) ----
    logits = logits_ref[...]                                    # (N, C)
    tgt = tgt_ref[...]                                          # (N, 1) int32
    m = jnp.max(logits, axis=1, keepdims=True)
    z = logits - m
    lse = jnp.log(jnp.sum(jnp.exp(z), axis=1, keepdims=True))
    logprobs = z - lse
    cols = lax.broadcasted_iota(jnp.int32, logits.shape, 1)
    onehot = (cols == tgt).astype(jnp.float32)
    nll = -jnp.sum(logprobs * onehot, axis=1, keepdims=True)    # (N, 1)
    loss_class = jnp.mean(nll)

    out_ref[0, 0] = loss_class + 0.1 * loss_cont + 0.2 * (loss_ortho + loss_spec)


def network_loss(output_logits, target_var, shared_stack, mutual_stack,
                 spec_stack, relation_stack):
    """Wrapper: merge feature stacks into one VMEM input; single grid point."""
    feat = jnp.concatenate(
        [shared_stack, mutual_stack, spec_stack, relation_stack], axis=0)
    vmem = pl.BlockSpec(memory_space=pltpu.MemorySpace.VMEM)
    out = pl.pallas_call(
        network_loss_kernel,
        out_shape=jax.ShapeDtypeStruct((1, 1), jnp.float32),
        in_specs=[vmem, vmem, vmem],
        out_specs=pl.BlockSpec(memory_space=pltpu.MemorySpace.SMEM),
    )(feat, output_logits, target_var)
    return out[0, 0]


# ---- pure-JAX reference (original formulation, for a correctness check) ----
def _ortho_ref(a, b):
    a = a - jnp.mean(a)
    b = b - jnp.mean(b)
    a = a / jnp.maximum(jnp.sqrt(jnp.sum(a * a, axis=1, keepdims=True)), NORM_EPS)
    b = b / jnp.maximum(jnp.sqrt(jnp.sum(b * b, axis=1, keepdims=True)), NORM_EPS)
    corr = jnp.matmul(a.T, b, precision=lax.Precision.HIGHEST)
    sq = jnp.matmul(corr, corr, precision=lax.Precision.HIGHEST)
    return jnp.maximum(jnp.mean(sq), 0.0)


def _network_loss_ref(logits, tgt, shared_stack, mutual_stack, spec_stack, rel_stack):
    loss_cont = 0.0
    for i in range(M_SHARED - 1):
        for j in range(i + 1, M_SHARED):
            diff = shared_stack[i] - shared_stack[j] + PD_EPS
            dist = jnp.sqrt(jnp.sum(diff * diff, axis=1))
            loss_cont = loss_cont + jnp.maximum(jnp.mean(dist ** 2), 0.0)
    shared_temp = jnp.sum(shared_stack, axis=0) / M_SHARED
    loss_ortho = 0.0
    for k in range(MI * MJ):
        loss_ortho = loss_ortho + _ortho_ref(shared_temp, mutual_stack[k])
    loss_spec = 0.0
    for k in range(K_SPEC):
        loss_spec = loss_spec + _ortho_ref(spec_stack[k], rel_stack[k])
    logprobs = jax.nn.log_softmax(logits, axis=1)
    nll = -jnp.take_along_axis(logprobs, tgt, axis=1)
    loss_class = jnp.mean(nll)
    return loss_class + 0.1 * loss_cont + 0.2 * (loss_ortho + loss_spec)


if __name__ == "__main__":
    key = jax.random.PRNGKey(0)
    ks = jax.random.split(key, 6)
    shared_stack = jax.random.normal(ks[0], (M_SHARED, N, D), jnp.float32)
    mutual_stack = jax.random.normal(ks[1], (MI * MJ, N, D), jnp.float32)
    spec_stack = jax.random.normal(ks[2], (K_SPEC, N, D), jnp.float32)
    relation_stack = jax.random.normal(ks[3], (K_SPEC, N, D), jnp.float32)
    logits = jax.random.normal(ks[4], (N, C), jnp.float32)
    target_var = jax.random.randint(ks[5], (N, 1), 0, C, jnp.int32)

    loss = network_loss(logits, target_var, shared_stack, mutual_stack,
                        spec_stack, relation_stack)
    loss = jax.block_until_ready(loss)
    assert bool(jnp.isfinite(loss)), "loss is not finite"

    ref = _network_loss_ref(logits, target_var, shared_stack, mutual_stack,
                            spec_stack, relation_stack)
    ref = jax.block_until_ready(ref)
    assert bool(jnp.allclose(loss, ref, rtol=1e-4, atol=1e-3)), (loss, ref)

    print("KERNEL_OK")
</pallas_src>

<mosaic_0001>
module attributes {stable_mosaic.version = 11 : i64} {
  func.func @network_loss_kernel(%arg0: memref<15x8x128xf32, #tpu.memory_space<vmem>>, %arg1: memref<8x16xf32, #tpu.memory_space<vmem>>, %arg2: memref<8x1xi32, #tpu.memory_space<vmem>>, %arg3: memref<1x1xf32, #tpu.memory_space<smem>>) attributes {dimension_semantics = [], scalar_prefetch = 0 : i64, scratch_operands = 0 : i64, tpu.core_type = #tpu.core_type<tc>} {
    %c0 = arith.constant 0 : index
    %c0_0 = arith.constant 0 : index
    %c0_1 = arith.constant 0 : index
    %0 = vector.load %arg0[%c0, %c0_0, %c0_1] : memref<15x8x128xf32, #tpu.memory_space<vmem>>, vector<1x8x128xf32>
    %1 = vector.shape_cast %0 : vector<1x8x128xf32> to vector<8x128xf32>
    %c1 = arith.constant 1 : index
    %c0_2 = arith.constant 0 : index
    %c0_3 = arith.constant 0 : index
    %2 = vector.load %arg0[%c1, %c0_2, %c0_3] : memref<15x8x128xf32, #tpu.memory_space<vmem>>, vector<1x8x128xf32>
    %3 = vector.shape_cast %2 : vector<1x8x128xf32> to vector<8x128xf32>
    %c2 = arith.constant 2 : index
    %c0_4 = arith.constant 0 : index
    %c0_5 = arith.constant 0 : index
    %4 = vector.load %arg0[%c2, %c0_4, %c0_5] : memref<15x8x128xf32, #tpu.memory_space<vmem>>, vector<1x8x128xf32>
    %5 = vector.shape_cast %4 : vector<1x8x128xf32> to vector<8x128xf32>
    %6 = arith.subf %1, %3 : vector<8x128xf32>
    %cst = arith.constant 9.99999997E-7 : f32
    %7 = vector.broadcast %cst : f32 to vector<8x128xf32>
    %8 = arith.addf %6, %7 : vector<8x128xf32>
    %9 = arith.mulf %8, %8 : vector<8x128xf32>
    %cst_6 = arith.constant dense<0.000000e+00> : vector<8xf32>
    %10 = vector.multi_reduction <add>, %9, %cst_6 [1] : vector<8x128xf32> to vector<8xf32>
    %11 = vector.shape_cast %10 : vector<8xf32> to vector<8x1xf32>
    %12 = vector.shape_cast %11 : vector<8x1xf32> to vector<1x8x1xf32>
    %cst_7 = arith.constant dense<0.000000e+00> : vector<1xf32>
    %13 = vector.multi_reduction <add>, %12, %cst_7 [1, 2] : vector<1x8x1xf32> to vector<1xf32>
    %14 = vector.shape_cast %13 : vector<1xf32> to vector<1x1x1xf32>
    %15 = vector.extract %14[0, 0, 0] : f32 from vector<1x1x1xf32>
    %cst_8 = arith.constant 8.000000e+00 : f32
    %16 = arith.divf %15, %cst_8 : f32
    %cst_9 = arith.constant 0.000000e+00 : f32
    %17 = arith.addf %cst_9, %16 : f32
    %18 = arith.subf %1, %5 : vector<8x128xf32>
    %cst_10 = arith.constant 9.99999997E-7 : f32
    %19 = vector.broadcast %cst_10 : f32 to vector<8x128xf32>
    %20 = arith.addf %18, %19 : vector<8x128xf32>
    %21 = arith.mulf %20, %20 : vector<8x128xf32>
    %cst_11 = arith.constant dense<0.000000e+00> : vector<8xf32>
    %22 = vector.multi_reduction <add>, %21, %cst_11 [1] : vector<8x128xf32> to vector<8xf32>
    %23 = vector.shape_cast %22 : vector<8xf32> to vector<8x1xf32>
    %24 = vector.shape_cast %23 : vector<8x1xf32> to vector<1x8x1xf32>
    %cst_12 = arith.constant dense<0.000000e+00> : vector<1xf32>
    %25 = vector.multi_reduction <add>, %24, %cst_12 [1, 2] : vector<1x8x1xf32> to vector<1xf32>
    %26 = vector.shape_cast %25 : vector<1xf32> to vector<1x1x1xf32>
    %27 = vector.extract %26[0, 0, 0] : f32 from vector<1x1x1xf32>
    %cst_13 = arith.constant 8.000000e+00 : f32
    %28 = arith.divf %27, %cst_13 : f32
    %29 = arith.addf %17, %28 : f32
    %30 = arith.subf %3, %5 : vector<8x128xf32>
    %cst_14 = arith.constant 9.99999997E-7 : f32
    %31 = vector.broadcast %cst_14 : f32 to vector<8x128xf32>
    %32 = arith.addf %30, %31 : vector<8x128xf32>
    %33 = arith.mulf %32, %32 : vector<8x128xf32>
    %cst_15 = arith.constant dense<0.000000e+00> : vector<8xf32>
    %34 = vector.multi_reduction <add>, %33, %cst_15 [1] : vector<8x128xf32> to vector<8xf32>
    %35 = vector.shape_cast %34 : vector<8xf32> to vector<8x1xf32>
    %36 = vector.shape_cast %35 : vector<8x1xf32> to vector<1x8x1xf32>
    %cst_16 = arith.constant dense<0.000000e+00> : vector<1xf32>
    %37 = vector.multi_reduction <add>, %36, %cst_16 [1, 2] : vector<1x8x1xf32> to vector<1xf32>
    %38 = vector.shape_cast %37 : vector<1xf32> to vector<1x1x1xf32>
    %39 = vector.extract %38[0, 0, 0] : f32 from vector<1x1x1xf32>
    %cst_17 = arith.constant 8.000000e+00 : f32
    %40 = arith.divf %39, %cst_17 : f32
    %41 = arith.addf %29, %40 : f32
    %42 = arith.addf %1, %3 : vector<8x128xf32>
    %43 = arith.addf %42, %5 : vector<8x128xf32>
    %cst_18 = arith.constant 0.333333343 : f32
    %44 = vector.broadcast %cst_18 : f32 to vector<8x128xf32>
    %45 = arith.mulf %43, %44 : vector<8x128xf32>
    %46 = vector.shape_cast %45 : vector<8x128xf32> to vector<1x8x128xf32>
    %cst_19 = arith.constant dense<0.000000e+00> : vector<1xf32>
    %47 = vector.multi_reduction <add>, %46, %cst_19 [1, 2] : vector<1x8x128xf32> to vector<1xf32>
    %48 = vector.shape_cast %47 : vector<1xf32> to vector<1x1x1xf32>
    %49 = vector.extract %48[0, 0, 0] : f32 from vector<1x1x1xf32>
    %cst_20 = arith.constant 1.024000e+03 : f32
    %50 = arith.divf %49, %cst_20 : f32
    %51 = vector.broadcast %50 : f32 to vector<8x128xf32>
    %52 = arith.subf %45, %51 : vector<8x128xf32>
    %53 = arith.mulf %52, %52 : vector<8x128xf32>
    %cst_21 = arith.constant dense<0.000000e+00> : vector<8xf32>
    %54 = vector.multi_reduction <add>, %53, %cst_21 [1] : vector<8x128xf32> to vector<8xf32>
    %55 = vector.shape_cast %54 : vector<8xf32> to vector<8x1xf32>
    %cst_22 = arith.constant 1.000000e-24 : f32
    %56 = vector.broadcast %cst_22 : f32 to vector<8x1xf32>
    %57 = arith.maximumf %55, %56 : vector<8x1xf32>
    %58 = math.rsqrt %57 : vector<8x1xf32>
    %59 = vector.broadcast %58 : vector<8x1xf32> to vector<8x128xf32>
    %60 = arith.mulf %52, %59 : vector<8x128xf32>
    %c3 = arith.constant 3 : index
    %c0_23 = arith.constant 0 : index
    %c0_24 = arith.constant 0 : index
    %61 = vector.load %arg0[%c3, %c0_23, %c0_24] : memref<15x8x128xf32, #tpu.memory_space<vmem>>, vector<1x8x128xf32>
    %62 = vector.shape_cast %61 : vector<1x8x128xf32> to vector<8x128xf32>
    %63 = vector.shape_cast %62 : vector<8x128xf32> to vector<1x8x128xf32>
    %cst_25 = arith.constant dense<0.000000e+00> : vector<1xf32>
    %64 = vector.multi_reduction <add>, %63, %cst_25 [1, 2] : vector<1x8x128xf32> to vector<1xf32>
    %65 = vector.shape_cast %64 : vector<1xf32> to vector<1x1x1xf32>
    %66 = vector.extract %65[0, 0, 0] : f32 from vector<1x1x1xf32>
    %cst_26 = arith.constant 1.024000e+03 : f32
    %67 = arith.divf %66, %cst_26 : f32
    %68 = vector.broadcast %67 : f32 to vector<8x128xf32>
    %69 = arith.subf %62, %68 : vector<8x128xf32>
    %70 = arith.mulf %69, %69 : vector<8x128xf32>
    %cst_27 = arith.constant dense<0.000000e+00> : vector<8xf32>
    %71 = vector.multi_reduction <add>, %70, %cst_27 [1] : vector<8x128xf32> to vector<8xf32>
    %72 = vector.shape_cast %71 : vector<8xf32> to vector<8x1xf32>
    %cst_28 = arith.constant 1.000000e-24 : f32
    %73 = vector.broadcast %cst_28 : f32 to vector<8x1xf32>
    %74 = arith.maximumf %72, %73 : vector<8x1xf32>
    %75 = math.rsqrt %74 : vector<8x1xf32>
    %76 = vector.broadcast %75 : vector<8x1xf32> to vector<8x128xf32>
    %77 = arith.mulf %69, %76 : vector<8x128xf32>
    %cst_29 = arith.constant dense<0.000000e+00> : vector<8xf32>
    %78 = vector.multi_reduction <add>, %60, %cst_29 [1] : vector<8x128xf32> to vector<8xf32>
    %79 = vector.shape_cast %78 : vector<8xf32> to vector<8x1xf32>
    %cst_30 = arith.constant dense<0.000000e+00> : vector<8xf32>
    %80 = vector.multi_reduction <add>, %77, %cst_30 [1] : vector<8x128xf32> to vector<8xf32>
    %81 = vector.shape_cast %80 : vector<8xf32> to vector<8x1xf32>
    %82 = vector.broadcast %79 : vector<8x1xf32> to vector<8x128xf32>
    %83 = arith.mulf %82, %77 : vector<8x128xf32>
    %cst_31 = arith.constant dense<0.000000e+00> : vector<128xf32>
    %84 = vector.multi_reduction <add>, %83, %cst_31 [0] : vector<8x128xf32> to vector<128xf32>
    %85 = vector.shape_cast %84 : vector<128xf32> to vector<1x128xf32>
    %86 = vector.broadcast %81 : vector<8x1xf32> to vector<8x128xf32>
    %87 = arith.mulf %86, %60 : vector<8x128xf32>
    %cst_32 = arith.constant dense<0.000000e+00> : vector<128xf32>
    %88 = vector.multi_reduction <add>, %87, %cst_32 [0] : vector<8x128xf32> to vector<128xf32>
    %89 = vector.shape_cast %88 : vector<128xf32> to vector<1x128xf32>
    %90 = arith.mulf %85, %89 : vector<1x128xf32>
    %91 = vector.shape_cast %90 : vector<1x128xf32> to vector<1x1x128xf32>
    %cst_33 = arith.constant dense<0.000000e+00> : vector<1xf32>
    %92 = vector.multi_reduction <add>, %91, %cst_33 [1, 2] : vector<1x1x128xf32> to vector<1xf32>
    %93 = vector.shape_cast %92 : vector<1xf32> to vector<1x1x1xf32>
    %94 = vector.extract %93[0, 0, 0] : f32 from vector<1x1x1xf32>
    %cst_34 = arith.constant 6.10351563E-5 : f32
    %95 = arith.mulf %94, %cst_34 : f32
    %cst_35 = arith.constant 0.000000e+00 : f32
    %96 = arith.maximumf %95, %cst_35 : f32
    %cst_36 = arith.constant 0.000000e+00 : f32
    %97 = arith.addf %cst_36, %96 : f32
    %c4 = arith.constant 4 : index
    %c0_37 = arith.constant 0 : index
    %c0_38 = arith.constant 0 : index
    %98 = vector.load %arg0[%c4, %c0_37, %c0_38] : memref<15x8x128xf32, #tpu.memory_space<vmem>>, vector<1x8x128xf32>
    %99 = vector.shape_cast %98 : vector<1x8x128xf32> to vector<8x128xf32>
    %100 = vector.shape_cast %99 : vector<8x128xf32> to vector<1x8x128xf32>
    %cst_39 = arith.constant dense<0.000000e+00> : vector<1xf32>
    %101 = vector.multi_reduction <add>, %100, %cst_39 [1, 2] : vector<1x8x128xf32> to vector<1xf32>
    %102 = vector.shape_cast %101 : vector<1xf32> to vector<1x1x1xf32>
    %103 = vector.extract %102[0, 0, 0] : f32 from vector<1x1x1xf32>
    %cst_40 = arith.constant 1.024000e+03 : f32
    %104 = arith.divf %103, %cst_40 : f32
    %105 = vector.broadcast %104 : f32 to vector<8x128xf32>
    %106 = arith.subf %99, %105 : vector<8x128xf32>
    %107 = arith.mulf %106, %106 : vector<8x128xf32>
    %cst_41 = arith.constant dense<0.000000e+00> : vector<8xf32>
    %108 = vector.multi_reduction <add>, %107, %cst_41 [1] : vector<8x128xf32> to vector<8xf32>
    %109 = vector.shape_cast %108 : vector<8xf32> to vector<8x1xf32>
    %cst_42 = arith.constant 1.000000e-24 : f32
    %110 = vector.broadcast %cst_42 : f32 to vector<8x1xf32>
    %111 = arith.maximumf %109, %110 : vector<8x1xf32>
    %112 = math.rsqrt %111 : vector<8x1xf32>
    %113 = vector.broadcast %112 : vector<8x1xf32> to vector<8x128xf32>
    %114 = arith.mulf %106, %113 : vector<8x128xf32>
    %cst_43 = arith.constant dense<0.000000e+00> : vector<8xf32>
    %115 = vector.multi_reduction <add>, %60, %cst_43 [1] : vector<8x128xf32> to vector<8xf32>
    %116 = vector.shape_cast %115 : vector<8xf32> to vector<8x1xf32>
    %cst_44 = arith.constant dense<0.000000e+00> : vector<8xf32>
    %117 = vector.multi_reduction <add>, %114, %cst_44 [1] : vector<8x128xf32> to vector<8xf32>
    %118 = vector.shape_cast %117 : vector<8xf32> to vector<8x1xf32>
    %119 = vector.broadcast %116 : vector<8x1xf32> to vector<8x128xf32>
    %120 = arith.mulf %119, %114 : vector<8x128xf32>
    %cst_45 = arith.constant dense<0.000000e+00> : vector<128xf32>
    %121 = vector.multi_reduction <add>, %120, %cst_45 [0] : vector<8x128xf32> to vector<128xf32>
    %122 = vector.shape_cast %121 : vector<128xf32> to vector<1x128xf32>
    %123 = vector.broadcast %118 : vector<8x1xf32> to vector<8x128xf32>
    %124 = arith.mulf %123, %60 : vector<8x128xf32>
    %cst_46 = arith.constant dense<0.000000e+00> : vector<128xf32>
    %125 = vector.multi_reduction <add>, %124, %cst_46 [0] : vector<8x128xf32> to vector<128xf32>
    %126 = vector.shape_cast %125 : vector<128xf32> to vector<1x128xf32>
    %127 = arith.mulf %122, %126 : vector<1x128xf32>
    %128 = vector.shape_cast %127 : vector<1x128xf32> to vector<1x1x128xf32>
    %cst_47 = arith.constant dense<0.000000e+00> : vector<1xf32>
    %129 = vector.multi_reduction <add>, %128, %cst_47 [1, 2] : vector<1x1x128xf32> to vector<1xf32>
    %130 = vector.shape_cast %129 : vector<1xf32> to vector<1x1x1xf32>
    %131 = vector.extract %130[0, 0, 0] : f32 from vector<1x1x1xf32>
    %cst_48 = arith.constant 6.10351563E-5 : f32
    %132 = arith.mulf %131, %cst_48 : f32
    %cst_49 = arith.constant 0.000000e+00 : f32
    %133 = arith.maximumf %132, %cst_49 : f32
    %134 = arith.addf %97, %133 : f32
    %c5 = arith.constant 5 : index
    %c0_50 = arith.constant 0 : index
    %c0_51 = arith.constant 0 : index
    %135 = vector.load %arg0[%c5, %c0_50, %c0_51] : memref<15x8x128xf32, #tpu.memory_space<vmem>>, vector<1x8x128xf32>
    %136 = vector.shape_cast %135 : vector<1x8x128xf32> to vector<8x128xf32>
    %137 = vector.shape_cast %136 : vector<8x128xf32> to vector<1x8x128xf32>
    %cst_52 = arith.constant dense<0.000000e+00> : vector<1xf32>
    %138 = vector.multi_reduction <add>, %137, %cst_52 [1, 2] : vector<1x8x128xf32> to vector<1xf32>
    %139 = vector.shape_cast %138 : vector<1xf32> to vector<1x1x1xf32>
    %140 = vector.extract %139[0, 0, 0] : f32 from vector<1x1x1xf32>
    %cst_53 = arith.constant 1.024000e+03 : f32
    %141 = arith.divf %140, %cst_53 : f32
    %142 = vector.broadcast %141 : f32 to vector<8x128xf32>
    %143 = arith.subf %136, %142 : vector<8x128xf32>
    %144 = arith.mulf %143, %143 : vector<8x128xf32>
    %cst_54 = arith.constant dense<0.000000e+00> : vector<8xf32>
    %145 = vector.multi_reduction <add>, %144, %cst_54 [1] : vector<8x128xf32> to vector<8xf32>
    %146 = vector.shape_cast %145 : vector<8xf32> to vector<8x1xf32>
    %cst_55 = arith.constant 1.000000e-24 : f32
    %147 = vector.broadcast %cst_55 : f32 to vector<8x1xf32>
    %148 = arith.maximumf %146, %147 : vector<8x1xf32>
    %149 = math.rsqrt %148 : vector<8x1xf32>
    %150 = vector.broadcast %149 : vector<8x1xf32> to vector<8x128xf32>
    %151 = arith.mulf %143, %150 : vector<8x128xf32>
    %cst_56 = arith.constant dense<0.000000e+00> : vector<8xf32>
    %152 = vector.multi_reduction <add>, %60, %cst_56 [1] : vector<8x128xf32> to vector<8xf32>
    %153 = vector.shape_cast %152 : vector<8xf32> to vector<8x1xf32>
    %cst_57 = arith.constant dense<0.000000e+00> : vector<8xf32>
    %154 = vector.multi_reduction <add>, %151, %cst_57 [1] : vector<8x128xf32> to vector<8xf32>
    %155 = vector.shape_cast %154 : vector<8xf32> to vector<8x1xf32>
    %156 = vector.broadcast %153 : vector<8x1xf32> to vector<8x128xf32>
    %157 = arith.mulf %156, %151 : vector<8x128xf32>
    %cst_58 = arith.constant dense<0.000000e+00> : vector<128xf32>
    %158 = vector.multi_reduction <add>, %157, %cst_58 [0] : vector<8x128xf32> to vector<128xf32>
    %159 = vector.shape_cast %158 : vector<128xf32> to vector<1x128xf32>
    %160 = vector.broadcast %155 : vector<8x1xf32> to vector<8x128xf32>
    %161 = arith.mulf %160, %60 : vector<8x128xf32>
    %cst_59 = arith.constant dense<0.000000e+00> : vector<128xf32>
    %162 = vector.multi_reduction <add>, %161, %cst_59 [0] : vector<8x128xf32> to vector<128xf32>
    %163 = vector.shape_cast %162 : vector<128xf32> to vector<1x128xf32>
    %164 = arith.mulf %159, %163 : vector<1x128xf32>
    %165 = vector.shape_cast %164 : vector<1x128xf32> to vector<1x1x128xf32>
    %cst_60 = arith.constant dense<0.000000e+00> : vector<1xf32>
    %166 = vector.multi_reduction <add>, %165, %cst_60 [1, 2] : vector<1x1x128xf32> to vector<1xf32>
    %167 = vector.shape_cast %166 : vector<1xf32> to vector<1x1x1xf32>
    %168 = vector.extract %167[0, 0, 0] : f32 from vector<1x1x1xf32>
    %cst_61 = arith.constant 6.10351563E-5 : f32
    %169 = arith.mulf %168, %cst_61 : f32
    %cst_62 = arith.constant 0.000000e+00 : f32
    %170 = arith.maximumf %169, %cst_62 : f32
    %171 = arith.addf %134, %170 : f32
    %c6 = arith.constant 6 : index
    %c0_63 = arith.constant 0 : index
    %c0_64 = arith.constant 0 : index
    %172 = vector.load %arg0[%c6, %c0_63, %c0_64] : memref<15x8x128xf32, #tpu.memory_space<vmem>>, vector<1x8x128xf32>
    %173 = vector.shape_cast %172 : vector<1x8x128xf32> to vector<8x128xf32>
    %174 = vector.shape_cast %173 : vector<8x128xf32> to vector<1x8x128xf32>
    %cst_65 = arith.constant dense<0.000000e+00> : vector<1xf32>
    %175 = vector.multi_reduction <add>, %174, %cst_65 [1, 2] : vector<1x8x128xf32> to vector<1xf32>
    %176 = vector.shape_cast %175 : vector<1xf32> to vector<1x1x1xf32>
    %177 = vector.extract %176[0, 0, 0] : f32 from vector<1x1x1xf32>
    %cst_66 = arith.constant 1.024000e+03 : f32
    %178 = arith.divf %177, %cst_66 : f32
    %179 = vector.broadcast %178 : f32 to vector<8x128xf32>
    %180 = arith.subf %173, %179 : vector<8x128xf32>
    %181 = arith.mulf %180, %180 : vector<8x128xf32>
    %cst_67 = arith.constant dense<0.000000e+00> : vector<8xf32>
    %182 = vector.multi_reduction <add>, %181, %cst_67 [1] : vector<8x128xf32> to vector<8xf32>
    %183 = vector.shape_cast %182 : vector<8xf32> to vector<8x1xf32>
    %cst_68 = arith.constant 1.000000e-24 : f32
    %184 = vector.broadcast %cst_68 : f32 to vector<8x1xf32>
    %185 = arith.maximumf %183, %184 : vector<8x1xf32>
    %186 = math.rsqrt %185 : vector<8x1xf32>
    %187 = vector.broadcast %186 : vector<8x1xf32> to vector<8x128xf32>
    %188 = arith.mulf %180, %187 : vector<8x128xf32>
    %cst_69 = arith.constant dense<0.000000e+00> : vector<8xf32>
    %189 = vector.multi_reduction <add>, %60, %cst_69 [1] : vector<8x128xf32> to vector<8xf32>
    %190 = vector.shape_cast %189 : vector<8xf32> to vector<8x1xf32>
    %cst_70 = arith.constant dense<0.000000e+00> : vector<8xf32>
    %191 = vector.multi_reduction <add>, %188, %cst_70 [1] : vector<8x128xf32> to vector<8xf32>
    %192 = vector.shape_cast %191 : vector<8xf32> to vector<8x1xf32>
    %193 = vector.broadcast %190 : vector<8x1xf32> to vector<8x128xf32>
    %194 = arith.mulf %193, %188 : vector<8x128xf32>
    %cst_71 = arith.constant dense<0.000000e+00> : vector<128xf32>
    %195 = vector.multi_reduction <add>, %194, %cst_71 [0] : vector<8x128xf32> to vector<128xf32>
    %196 = vector.shape_cast %195 : vector<128xf32> to vector<1x128xf32>
    %197 = vector.broadcast %192 : vector<8x1xf32> to vector<8x128xf32>
    %198 = arith.mulf %197, %60 : vector<8x128xf32>
    %cst_72 = arith.constant dense<0.000000e+00> : vector<128xf32>
    %199 = vector.multi_reduction <add>, %198, %cst_72 [0] : vector<8x128xf32> to vector<128xf32>
    %200 = vector.shape_cast %199 : vector<128xf32> to vector<1x128xf32>
    %201 = arith.mulf %196, %200 : vector<1x128xf32>
    %202 = vector.shape_cast %201 : vector<1x128xf32> to vector<1x1x128xf32>
    %cst_73 = arith.constant dense<0.000000e+00> : vector<1xf32>
    %203 = vector.multi_reduction <add>, %202, %cst_73 [1, 2] : vector<1x1x128xf32> to vector<1xf32>
    %204 = vector.shape_cast %203 : vector<1xf32> to vector<1x1x1xf32>
    %205 = vector.extract %204[0, 0, 0] : f32 from vector<1x1x1xf32>
    %cst_74 = arith.constant 6.10351563E-5 : f32
    %206 = arith.mulf %205, %cst_74 : f32
    %cst_75 = arith.constant 0.000000e+00 : f32
    %207 = arith.maximumf %206, %cst_75 : f32
    %208 = arith.addf %171, %207 : f32
    %c7 = arith.constant 7 : index
    %c0_76 = arith.constant 0 : index
    %c0_77 = arith.constant 0 : index
    %209 = vector.load %arg0[%c7, %c0_76, %c0_77] : memref<15x8x128xf32, #tpu.memory_space<vmem>>, vector<1x8x128xf32>
    %210 = vector.shape_cast %209 : vector<1x8x128xf32> to vector<8x128xf32>
    %211 = vector.shape_cast %210 : vector<8x128xf32> to vector<1x8x128xf32>
    %cst_78 = arith.constant dense<0.000000e+00> : vector<1xf32>
    %212 = vector.multi_reduction <add>, %211, %cst_78 [1, 2] : vector<1x8x128xf32> to vector<1xf32>
    %213 = vector.shape_cast %212 : vector<1xf32> to vector<1x1x1xf32>
    %214 = vector.extract %213[0, 0, 0] : f32 from vector<1x1x1xf32>
    %cst_79 = arith.constant 1.024000e+03 : f32
    %215 = arith.divf %214, %cst_79 : f32
    %216 = vector.broadcast %215 : f32 to vector<8x128xf32>
    %217 = arith.subf %210, %216 : vector<8x128xf32>
    %218 = arith.mulf %217, %217 : vector<8x128xf32>
    %cst_80 = arith.constant dense<0.000000e+00> : vector<8xf32>
    %219 = vector.multi_reduction <add>, %218, %cst_80 [1] : vector<8x128xf32> to vector<8xf32>
    %220 = vector.shape_cast %219 : vector<8xf32> to vector<8x1xf32>
    %cst_81 = arith.constant 1.000000e-24 : f32
    %221 = vector.broadcast %cst_81 : f32 to vector<8x1xf32>
    %222 = arith.maximumf %220, %221 : vector<8x1xf32>
    %223 = math.rsqrt %222 : vector<8x1xf32>
    %224 = vector.broadcast %223 : vector<8x1xf32> to vector<8x128xf32>
    %225 = arith.mulf %217, %224 : vector<8x128xf32>
    %cst_82 = arith.constant dense<0.000000e+00> : vector<8xf32>
    %226 = vector.multi_reduction <add>, %60, %cst_82 [1] : vector<8x128xf32> to vector<8xf32>
    %227 = vector.shape_cast %226 : vector<8xf32> to vector<8x1xf32>
    %cst_83 = arith.constant dense<0.000000e+00> : vector<8xf32>
    %228 = vector.multi_reduction <add>, %225, %cst_83 [1] : vector<8x128xf32> to vector<8xf32>
    %229 = vector.shape_cast %228 : vector<8xf32> to vector<8x1xf32>
    %230 = vector.broadcast %227 : vector<8x1xf32> to vector<8x128xf32>
    %231 = arith.mulf %230, %225 : vector<8x128xf32>
    %cst_84 = arith.constant dense<0.000000e+00> : vector<128xf32>
    %232 = vector.multi_reduction <add>, %231, %cst_84 [0] : vector<8x128xf32> to vector<128xf32>
    %233 = vector.shape_cast %232 : vector<128xf32> to vector<1x128xf32>
    %234 = vector.broadcast %229 : vector<8x1xf32> to vector<8x128xf32>
    %235 = arith.mulf %234, %60 : vector<8x128xf32>
    %cst_85 = arith.constant dense<0.000000e+00> : vector<128xf32>
    %236 = vector.multi_reduction <add>, %235, %cst_85 [0] : vector<8x128xf32> to vector<128xf32>
    %237 = vector.shape_cast %236 : vector<128xf32> to vector<1x128xf32>
    %238 = arith.mulf %233, %237 : vector<1x128xf32>
    %239 = vector.shape_cast %238 : vector<1x128xf32> to vector<1x1x128xf32>
    %cst_86 = arith.constant dense<0.000000e+00> : vector<1xf32>
    %240 = vector.multi_reduction <add>, %239, %cst_86 [1, 2] : vector<1x1x128xf32> to vector<1xf32>
    %241 = vector.shape_cast %240 : vector<1xf32> to vector<1x1x1xf32>
    %242 = vector.extract %241[0, 0, 0] : f32 from vector<1x1x1xf32>
    %cst_87 = arith.constant 6.10351563E-5 : f32
    %243 = arith.mulf %242, %cst_87 : f32
    %cst_88 = arith.constant 0.000000e+00 : f32
    %244 = arith.maximumf %243, %cst_88 : f32
    %245 = arith.addf %208, %244 : f32
    %c8 = arith.constant 8 : index
    %c0_89 = arith.constant 0 : index
    %c0_90 = arith.constant 0 : index
    %246 = vector.load %arg0[%c8, %c0_89, %c0_90] : memref<15x8x128xf32, #tpu.memory_space<vmem>>, vector<1x8x128xf32>
    %247 = vector.shape_cast %246 : vector<1x8x128xf32> to vector<8x128xf32>
    %248 = vector.shape_cast %247 : vector<8x128xf32> to vector<1x8x128xf32>
    %cst_91 = arith.constant dense<0.000000e+00> : vector<1xf32>
    %249 = vector.multi_reduction <add>, %248, %cst_91 [1, 2] : vector<1x8x128xf32> to vector<1xf32>
    %250 = vector.shape_cast %249 : vector<1xf32> to vector<1x1x1xf32>
    %251 = vector.extract %250[0, 0, 0] : f32 from vector<1x1x1xf32>
    %cst_92 = arith.constant 1.024000e+03 : f32
    %252 = arith.divf %251, %cst_92 : f32
    %253 = vector.broadcast %252 : f32 to vector<8x128xf32>
    %254 = arith.subf %247, %253 : vector<8x128xf32>
    %255 = arith.mulf %254, %254 : vector<8x128xf32>
    %cst_93 = arith.constant dense<0.000000e+00> : vector<8xf32>
    %256 = vector.multi_reduction <add>, %255, %cst_93 [1] : vector<8x128xf32> to vector<8xf32>
    %257 = vector.shape_cast %256 : vector<8xf32> to vector<8x1xf32>
    %cst_94 = arith.constant 1.000000e-24 : f32
    %258 = vector.broadcast %cst_94 : f32 to vector<8x1xf32>
    %259 = arith.maximumf %257, %258 : vector<8x1xf32>
    %260 = math.rsqrt %259 : vector<8x1xf32>
    %261 = vector.broadcast %260 : vector<8x1xf32> to vector<8x128xf32>
    %262 = arith.mulf %254, %261 : vector<8x128xf32>
    %cst_95 = arith.constant dense<0.000000e+00> : vector<8xf32>
    %263 = vector.multi_reduction <add>, %60, %cst_95 [1] : vector<8x128xf32> to vector<8xf32>
    %264 = vector.shape_cast %263 : vector<8xf32> to vector<8x1xf32>
    %cst_96 = arith.constant dense<0.000000e+00> : vector<8xf32>
    %265 = vector.multi_reduction <add>, %262, %cst_96 [1] : vector<8x128xf32> to vector<8xf32>
    %266 = vector.shape_cast %265 : vector<8xf32> to vector<8x1xf32>
    %267 = vector.broadcast %264 : vector<8x1xf32> to vector<8x128xf32>
    %268 = arith.mulf %267, %262 : vector<8x128xf32>
    %cst_97 = arith.constant dense<0.000000e+00> : vector<128xf32>
    %269 = vector.multi_reduction <add>, %268, %cst_97 [0] : vector<8x128xf32> to vector<128xf32>
    %270 = vector.shape_cast %269 : vector<128xf32> to vector<1x128xf32>
    %271 = vector.broadcast %266 : vector<8x1xf32> to vector<8x128xf32>
    %272 = arith.mulf %271, %60 : vector<8x128xf32>
    %cst_98 = arith.constant dense<0.000000e+00> : vector<128xf32>
    %273 = vector.multi_reduction <add>, %272, %cst_98 [0] : vector<8x128xf32> to vector<128xf32>
    %274 = vector.shape_cast %273 : vector<128xf32> to vector<1x128xf32>
    %275 = arith.mulf %270, %274 : vector<1x128xf32>
    %276 = vector.shape_cast %275 : vector<1x128xf32> to vector<1x1x128xf32>
    %cst_99 = arith.constant dense<0.000000e+00> : vector<1xf32>
    %277 = vector.multi_reduction <add>, %276, %cst_99 [1, 2] : vector<1x1x128xf32> to vector<1xf32>
    %278 = vector.shape_cast %277 : vector<1xf32> to vector<1x1x1xf32>
    %279 = vector.extract %278[0, 0, 0] : f32 from vector<1x1x1xf32>
    %cst_100 = arith.constant 6.10351563E-5 : f32
    %280 = arith.mulf %279, %cst_100 : f32
    %cst_101 = arith.constant 0.000000e+00 : f32
    %281 = arith.maximumf %280, %cst_101 : f32
    %282 = arith.addf %245, %281 : f32
    %c9 = arith.constant 9 : index
    %c0_102 = arith.constant 0 : index
    %c0_103 = arith.constant 0 : index
    %283 = vector.load %arg0[%c9, %c0_102, %c0_103] : memref<15x8x128xf32, #tpu.memory_space<vmem>>, vector<1x8x128xf32>
    %284 = vector.shape_cast %283 : vector<1x8x128xf32> to vector<8x128xf32>
    %285 = vector.shape_cast %284 : vector<8x128xf32> to vector<1x8x128xf32>
    %cst_104 = arith.constant dense<0.000000e+00> : vector<1xf32>
    %286 = vector.multi_reduction <add>, %285, %cst_104 [1, 2] : vector<1x8x128xf32> to vector<1xf32>
    %287 = vector.shape_cast %286 : vector<1xf32> to vector<1x1x1xf32>
    %288 = vector.extract %287[0, 0, 0] : f32 from vector<1x1x1xf32>
    %cst_105 = arith.constant 1.024000e+03 : f32
    %289 = arith.divf %288, %cst_105 : f32
    %290 = vector.broadcast %289 : f32 to vector<8x128xf32>
    %291 = arith.subf %284, %290 : vector<8x128xf32>
    %292 = arith.mulf %291, %291 : vector<8x128xf32>
    %cst_106 = arith.constant dense<0.000000e+00> : vector<8xf32>
    %293 = vector.multi_reduction <add>, %292, %cst_106 [1] : vector<8x128xf32> to vector<8xf32>
    %294 = vector.shape_cast %293 : vector<8xf32> to vector<8x1xf32>
    %cst_107 = arith.constant 1.000000e-24 : f32
    %295 = vector.broadcast %cst_107 : f32 to vector<8x1xf32>
    %296 = arith.maximumf %294, %295 : vector<8x1xf32>
    %297 = math.rsqrt %296 : vector<8x1xf32>
    %298 = vector.broadcast %297 : vector<8x1xf32> to vector<8x128xf32>
    %299 = arith.mulf %291, %298 : vector<8x128xf32>
    %c12 = arith.constant 12 : index
    %c0_108 = arith.constant 0 : index
    %c0_109 = arith.constant 0 : index
    %300 = vector.load %arg0[%c12, %c0_108, %c0_109] : memref<15x8x128xf32, #tpu.memory_space<vmem>>, vector<1x8x128xf32>
    %301 = vector.shape_cast %300 : vector<1x8x128xf32> to vector<8x128xf32>
    %302 = vector.shape_cast %301 : vector<8x128xf32> to vector<1x8x128xf32>
    %cst_110 = arith.constant dense<0.000000e+00> : vector<1xf32>
    %303 = vector.multi_reduction <add>, %302, %cst_110 [1, 2] : vector<1x8x128xf32> to vector<1xf32>
    %304 = vector.shape_cast %303 : vector<1xf32> to vector<1x1x1xf32>
    %305 = vector.extract %304[0, 0, 0] : f32 from vector<1x1x1xf32>
    %cst_111 = arith.constant 1.024000e+03 : f32
    %306 = arith.divf %305, %cst_111 : f32
    %307 = vector.broadcast %306 : f32 to vector<8x128xf32>
    %308 = arith.subf %301, %307 : vector<8x128xf32>
    %309 = arith.mulf %308, %308 : vector<8x128xf32>
    %cst_112 = arith.constant dense<0.000000e+00> : vector<8xf32>
    %310 = vector.multi_reduction <add>, %309, %cst_112 [1] : vector<8x128xf32> to vector<8xf32>
    %311 = vector.shape_cast %310 : vector<8xf32> to vector<8x1xf32>
    %cst_113 = arith.constant 1.000000e-24 : f32
    %312 = vector.broadcast %cst_113 : f32 to vector<8x1xf32>
    %313 = arith.maximumf %311, %312 : vector<8x1xf32>
    %314 = math.rsqrt %313 : vector<8x1xf32>
    %315 = vector.broadcast %314 : vector<8x1xf32> to vector<8x128xf32>
    %316 = arith.mulf %308, %315 : vector<8x128xf32>
    %cst_114 = arith.constant dense<0.000000e+00> : vector<8xf32>
    %317 = vector.multi_reduction <add>, %299, %cst_114 [1] : vector<8x128xf32> to vector<8xf32>
    %318 = vector.shape_cast %317 : vector<8xf32> to vector<8x1xf32>
    %cst_115 = arith.constant dense<0.000000e+00> : vector<8xf32>
    %319 = vector.multi_reduction <add>, %316, %cst_115 [1] : vector<8x128xf32> to vector<8xf32>
    %320 = vector.shape_cast %319 : vector<8xf32> to vector<8x1xf32>
    %321 = vector.broadcast %318 : vector<8x1xf32> to vector<8x128xf32>
    %322 = arith.mulf %321, %316 : vector<8x128xf32>
    %cst_116 = arith.constant dense<0.000000e+00> : vector<128xf32>
    %323 = vector.multi_reduction <add>, %322, %cst_116 [0] : vector<8x128xf32> to vector<128xf32>
    %324 = vector.shape_cast %323 : vector<128xf32> to vector<1x128xf32>
    %325 = vector.broadcast %320 : vector<8x1xf32> to vector<8x128xf32>
    %326 = arith.mulf %325, %299 : vector<8x128xf32>
    %cst_117 = arith.constant dense<0.000000e+00> : vector<128xf32>
    %327 = vector.multi_reduction <add>, %326, %cst_117 [0] : vector<8x128xf32> to vector<128xf32>
    %328 = vector.shape_cast %327 : vector<128xf32> to vector<1x128xf32>
    %329 = arith.mulf %324, %328 : vector<1x128xf32>
    %330 = vector.shape_cast %329 : vector<1x128xf32> to vector<1x1x128xf32>
    %cst_118 = arith.constant dense<0.000000e+00> : vector<1xf32>
    %331 = vector.multi_reduction <add>, %330, %cst_118 [1, 2] : vector<1x1x128xf32> to vector<1xf32>
    %332 = vector.shape_cast %331 : vector<1xf32> to vector<1x1x1xf32>
    %333 = vector.extract %332[0, 0, 0] : f32 from vector<1x1x1xf32>
    %cst_119 = arith.constant 6.10351563E-5 : f32
    %334 = arith.mulf %333, %cst_119 : f32
    %cst_120 = arith.constant 0.000000e+00 : f32
    %335 = arith.maximumf %334, %cst_120 : f32
    %cst_121 = arith.constant 0.000000e+00 : f32
    %336 = arith.addf %cst_121, %335 : f32
    %c10 = arith.constant 10 : index
    %c0_122 = arith.constant 0 : index
    %c0_123 = arith.constant 0 : index
    %337 = vector.load %arg0[%c10, %c0_122, %c0_123] : memref<15x8x128xf32, #tpu.memory_space<vmem>>, vector<1x8x128xf32>
    %338 = vector.shape_cast %337 : vector<1x8x128xf32> to vector<8x128xf32>
    %339 = vector.shape_cast %338 : vector<8x128xf32> to vector<1x8x128xf32>
    %cst_124 = arith.constant dense<0.000000e+00> : vector<1xf32>
    %340 = vector.multi_reduction <add>, %339, %cst_124 [1, 2] : vector<1x8x128xf32> to vector<1xf32>
    %341 = vector.shape_cast %340 : vector<1xf32> to vector<1x1x1xf32>
    %342 = vector.extract %341[0, 0, 0] : f32 from vector<1x1x1xf32>
    %cst_125 = arith.constant 1.024000e+03 : f32
    %343 = arith.divf %342, %cst_125 : f32
    %344 = vector.broadcast %343 : f32 to vector<8x128xf32>
    %345 = arith.subf %338, %344 : vector<8x128xf32>
    %346 = arith.mulf %345, %345 : vector<8x128xf32>
    %cst_126 = arith.constant dense<0.000000e+00> : vector<8xf32>
    %347 = vector.multi_reduction <add>, %346, %cst_126 [1] : vector<8x128xf32> to vector<8xf32>
    %348 = vector.shape_cast %347 : vector<8xf32> to vector<8x1xf32>
    %cst_127 = arith.constant 1.000000e-24 : f32
    %349 = vector.broadcast %cst_127 : f32 to vector<8x1xf32>
    %350 = arith.maximumf %348, %349 : vector<8x1xf32>
    %351 = math.rsqrt %350 : vector<8x1xf32>
    %352 = vector.broadcast %351 : vector<8x1xf32> to vector<8x128xf32>
    %353 = arith.mulf %345, %352 : vector<8x128xf32>
    %c13 = arith.constant 13 : index
    %c0_128 = arith.constant 0 : index
    %c0_129 = arith.constant 0 : index
    %354 = vector.load %arg0[%c13, %c0_128, %c0_129] : memref<15x8x128xf32, #tpu.memory_space<vmem>>, vector<1x8x128xf32>
    %355 = vector.shape_cast %354 : vector<1x8x128xf32> to vector<8x128xf32>
    %356 = vector.shape_cast %355 : vector<8x128xf32> to vector<1x8x128xf32>
    %cst_130 = arith.constant dense<0.000000e+00> : vector<1xf32>
    %357 = vector.multi_reduction <add>, %356, %cst_130 [1, 2] : vector<1x8x128xf32> to vector<1xf32>
    %358 = vector.shape_cast %357 : vector<1xf32> to vector<1x1x1xf32>
    %359 = vector.extract %358[0, 0, 0] : f32 from vector<1x1x1xf32>
    %cst_131 = arith.constant 1.024000e+03 : f32
    %360 = arith.divf %359, %cst_131 : f32
    %361 = vector.broadcast %360 : f32 to vector<8x128xf32>
    %362 = arith.subf %355, %361 : vector<8x128xf32>
    %363 = arith.mulf %362, %362 : vector<8x128xf32>
    %cst_132 = arith.constant dense<0.000000e+00> : vector<8xf32>
    %364 = vector.multi_reduction <add>, %363, %cst_132 [1] : vector<8x128xf32> to vector<8xf32>
    %365 = vector.shape_cast %364 : vector<8xf32> to vector<8x1xf32>
    %cst_133 = arith.constant 1.000000e-24 : f32
    %366 = vector.broadcast %cst_133 : f32 to vector<8x1xf32>
    %367 = arith.maximumf %365, %366 : vector<8x1xf32>
    %368 = math.rsqrt %367 : vector<8x1xf32>
    %369 = vector.broadcast %368 : vector<8x1xf32> to vector<8x128xf32>
    %370 = arith.mulf %362, %369 : vector<8x128xf32>
    %cst_134 = arith.constant dense<0.000000e+00> : vector<8xf32>
    %371 = vector.multi_reduction <add>, %353, %cst_134 [1] : vector<8x128xf32> to vector<8xf32>
    %372 = vector.shape_cast %371 : vector<8xf32> to vector<8x1xf32>
    %cst_135 = arith.constant dense<0.000000e+00> : vector<8xf32>
    %373 = vector.multi_reduction <add>, %370, %cst_135 [1] : vector<8x128xf32> to vector<8xf32>
    %374 = vector.shape_cast %373 : vector<8xf32> to vector<8x1xf32>
    %375 = vector.broadcast %372 : vector<8x1xf32> to vector<8x128xf32>
    %376 = arith.mulf %375, %370 : vector<8x128xf32>
    %cst_136 = arith.constant dense<0.000000e+00> : vector<128xf32>
    %377 = vector.multi_reduction <add>, %376, %cst_136 [0] : vector<8x128xf32> to vector<128xf32>
    %378 = vector.shape_cast %377 : vector<128xf32> to vector<1x128xf32>
    %379 = vector.broadcast %374 : vector<8x1xf32> to vector<8x128xf32>
    %380 = arith.mulf %379, %353 : vector<8x128xf32>
    %cst_137 = arith.constant dense<0.000000e+00> : vector<128xf32>
    %381 = vector.multi_reduction <add>, %380, %cst_137 [0] : vector<8x128xf32> to vector<128xf32>
    %382 = vector.shape_cast %381 : vector<128xf32> to vector<1x128xf32>
    %383 = arith.mulf %378, %382 : vector<1x128xf32>
    %384 = vector.shape_cast %383 : vector<1x128xf32> to vector<1x1x128xf32>
    %cst_138 = arith.constant dense<0.000000e+00> : vector<1xf32>
    %385 = vector.multi_reduction <add>, %384, %cst_138 [1, 2] : vector<1x1x128xf32> to vector<1xf32>
    %386 = vector.shape_cast %385 : vector<1xf32> to vector<1x1x1xf32>
    %387 = vector.extract %386[0, 0, 0] : f32 from vector<1x1x1xf32>
    %cst_139 = arith.constant 6.10351563E-5 : f32
    %388 = arith.mulf %387, %cst_139 : f32
    %cst_140 = arith.constant 0.000000e+00 : f32
    %389 = arith.maximumf %388, %cst_140 : f32
    %390 = arith.addf %336, %389 : f32
    %c11 = arith.constant 11 : index
    %c0_141 = arith.constant 0 : index
    %c0_142 = arith.constant 0 : index
    %391 = vector.load %arg0[%c11, %c0_141, %c0_142] : memref<15x8x128xf32, #tpu.memory_space<vmem>>, vector<1x8x128xf32>
    %392 = vector.shape_cast %391 : vector<1x8x128xf32> to vector<8x128xf32>
    %393 = vector.shape_cast %392 : vector<8x128xf32> to vector<1x8x128xf32>
    %cst_143 = arith.constant dense<0.000000e+00> : vector<1xf32>
    %394 = vector.multi_reduction <add>, %393, %cst_143 [1, 2] : vector<1x8x128xf32> to vector<1xf32>
    %395 = vector.shape_cast %394 : vector<1xf32> to vector<1x1x1xf32>
    %396 = vector.extract %395[0, 0, 0] : f32 from vector<1x1x1xf32>
    %cst_144 = arith.constant 1.024000e+03 : f32
    %397 = arith.divf %396, %cst_144 : f32
    %398 = vector.broadcast %397 : f32 to vector<8x128xf32>
    %399 = arith.subf %392, %398 : vector<8x128xf32>
    %400 = arith.mulf %399, %399 : vector<8x128xf32>
    %cst_145 = arith.constant dense<0.000000e+00> : vector<8xf32>
    %401 = vector.multi_reduction <add>, %400, %cst_145 [1] : vector<8x128xf32> to vector<8xf32>
    %402 = vector.shape_cast %401 : vector<8xf32> to vector<8x1xf32>
    %cst_146 = arith.constant 1.000000e-24 : f32
    %403 = vector.broadcast %cst_146 : f32 to vector<8x1xf32>
    %404 = arith.maximumf %402, %403 : vector<8x1xf32>
    %405 = math.rsqrt %404 : vector<8x1xf32>
    %406 = vector.broadcast %405 : vector<8x1xf32> to vector<8x128xf32>
    %407 = arith.mulf %399, %406 : vector<8x128xf32>
    %c14 = arith.constant 14 : index
    %c0_147 = arith.constant 0 : index
    %c0_148 = arith.constant 0 : index
    %408 = vector.load %arg0[%c14, %c0_147, %c0_148] : memref<15x8x128xf32, #tpu.memory_space<vmem>>, vector<1x8x128xf32>
    %409 = vector.shape_cast %408 : vector<1x8x128xf32> to vector<8x128xf32>
    %410 = vector.shape_cast %409 : vector<8x128xf32> to vector<1x8x128xf32>
    %cst_149 = arith.constant dense<0.000000e+00> : vector<1xf32>
    %411 = vector.multi_reduction <add>, %410, %cst_149 [1, 2] : vector<1x8x128xf32> to vector<1xf32>
    %412 = vector.shape_cast %411 : vector<1xf32> to vector<1x1x1xf32>
    %413 = vector.extract %412[0, 0, 0] : f32 from vector<1x1x1xf32>
    %cst_150 = arith.constant 1.024000e+03 : f32
    %414 = arith.divf %413, %cst_150 : f32
    %415 = vector.broadcast %414 : f32 to vector<8x128xf32>
    %416 = arith.subf %409, %415 : vector<8x128xf32>
    %417 = arith.mulf %416, %416 : vector<8x128xf32>
    %cst_151 = arith.constant dense<0.000000e+00> : vector<8xf32>
    %418 = vector.multi_reduction <add>, %417, %cst_151 [1] : vector<8x128xf32> to vector<8xf32>
    %419 = vector.shape_cast %418 : vector<8xf32> to vector<8x1xf32>
    %cst_152 = arith.constant 1.000000e-24 : f32
    %420 = vector.broadcast %cst_152 : f32 to vector<8x1xf32>
    %421 = arith.maximumf %419, %420 : vector<8x1xf32>
    %422 = math.rsqrt %421 : vector<8x1xf32>
    %423 = vector.broadcast %422 : vector<8x1xf32> to vector<8x128xf32>
    %424 = arith.mulf %416, %423 : vector<8x128xf32>
    %cst_153 = arith.constant dense<0.000000e+00> : vector<8xf32>
    %425 = vector.multi_reduction <add>, %407, %cst_153 [1] : vector<8x128xf32> to vector<8xf32>
    %426 = vector.shape_cast %425 : vector<8xf32> to vector<8x1xf32>
    %cst_154 = arith.constant dense<0.000000e+00> : vector<8xf32>
    %427 = vector.multi_reduction <add>, %424, %cst_154 [1] : vector<8x128xf32> to vector<8xf32>
    %428 = vector.shape_cast %427 : vector<8xf32> to vector<8x1xf32>
    %429 = vector.broadcast %426 : vector<8x1xf32> to vector<8x128xf32>
    %430 = arith.mulf %429, %424 : vector<8x128xf32>
    %cst_155 = arith.constant dense<0.000000e+00> : vector<128xf32>
    %431 = vector.multi_reduction <add>, %430, %cst_155 [0] : vector<8x128xf32> to vector<128xf32>
    %432 = vector.shape_cast %431 : vector<128xf32> to vector<1x128xf32>
    %433 = vector.broadcast %428 : vector<8x1xf32> to vector<8x128xf32>
    %434 = arith.mulf %433, %407 : vector<8x128xf32>
    %cst_156 = arith.constant dense<0.000000e+00> : vector<128xf32>
    %435 = vector.multi_reduction <add>, %434, %cst_156 [0] : vector<8x128xf32> to vector<128xf32>
    %436 = vector.shape_cast %435 : vector<128xf32> to vector<1x128xf32>
    %437 = arith.mulf %432, %436 : vector<1x128xf32>
    %438 = vector.shape_cast %437 : vector<1x128xf32> to vector<1x1x128xf32>
    %cst_157 = arith.constant dense<0.000000e+00> : vector<1xf32>
    %439 = vector.multi_reduction <add>, %438, %cst_157 [1, 2] : vector<1x1x128xf32> to vector<1xf32>
    %440 = vector.shape_cast %439 : vector<1xf32> to vector<1x1x1xf32>
    %441 = vector.extract %440[0, 0, 0] : f32 from vector<1x1x1xf32>
    %cst_158 = arith.constant 6.10351563E-5 : f32
    %442 = arith.mulf %441, %cst_158 : f32
    %cst_159 = arith.constant 0.000000e+00 : f32
    %443 = arith.maximumf %442, %cst_159 : f32
    %444 = arith.addf %390, %443 : f32
    %c0_160 = arith.constant 0 : index
    %c0_161 = arith.constant 0 : index
    %445 = vector.load %arg1[%c0_160, %c0_161] : memref<8x16xf32, #tpu.memory_space<vmem>>, vector<8x16xf32>
    %c0_162 = arith.constant 0 : index
    %c0_163 = arith.constant 0 : index
    %446 = vector.load %arg2[%c0_162, %c0_163] : memref<8x1xi32, #tpu.memory_space<vmem>>, vector<8x1xi32>
    %cst_164 = arith.constant dense<0xFF800000> : vector<8xf32>
    %447 = vector.multi_reduction <maximumf>, %445, %cst_164 [1] : vector<8x16xf32> to vector<8xf32>
    %448 = vector.shape_cast %447 : vector<8xf32> to vector<8x1xf32>
    %449 = vector.broadcast %448 : vector<8x1xf32> to vector<8x16xf32>
    %450 = arith.subf %445, %449 : vector<8x16xf32>
    %451 = math.exp %450 : vector<8x16xf32>
    %cst_165 = arith.constant dense<0.000000e+00> : vector<8xf32>
    %452 = vector.multi_reduction <add>, %451, %cst_165 [1] : vector<8x16xf32> to vector<8xf32>
    %453 = vector.shape_cast %452 : vector<8xf32> to vector<8x1xf32>
    %454 = math.log %453 : vector<8x1xf32>
    %455 = vector.broadcast %454 : vector<8x1xf32> to vector<8x16xf32>
    %456 = arith.subf %450, %455 : vector<8x16xf32>
    %457 = tpu.iota {dimensions = array<i32: 1>} : vector<8x16xi32>
    %458 = vector.broadcast %446 : vector<8x1xi32> to vector<8x16xi32>
    %459 = arith.cmpi eq, %457, %458 : vector<8x16xi32>
    %460 = arith.extui %459 : vector<8x16xi1> to vector<8x16xi32>
    %461 = arith.sitofp %460 : vector<8x16xi32> to vector<8x16xf32>
    %462 = arith.mulf %456, %461 : vector<8x16xf32>
    %cst_166 = arith.constant dense<0.000000e+00> : vector<8xf32>
    %463 = vector.multi_reduction <add>, %462, %cst_166 [1] : vector<8x16xf32> to vector<8xf32>
    %464 = vector.shape_cast %463 : vector<8xf32> to vector<8x1xf32>
    %cst_167 = arith.constant 0.000000e+00 : f32
    %465 = vector.broadcast %cst_167 : f32 to vector<8x1xf32>
    %466 = arith.subf %465, %464 : vector<8x1xf32>
    %467 = vector.shape_cast %466 : vector<8x1xf32> to vector<1x8x1xf32>
    %cst_168 = arith.constant dense<0.000000e+00> : vector<1xf32>
    %468 = vector.multi_reduction <add>, %467, %cst_168 [1, 2] : vector<1x8x1xf32> to vector<1xf32>
    %469 = vector.shape_cast %468 : vector<1xf32> to vector<1x1x1xf32>
    %470 = vector.extract %469[0, 0, 0] : f32 from vector<1x1x1xf32>
    %cst_169 = arith.constant 8.000000e+00 : f32
    %471 = arith.divf %470, %cst_169 : f32
    %cst_170 = arith.constant 1.000000e-01 : f32
    %472 = arith.mulf %cst_170, %41 : f32
    %473 = arith.addf %471, %472 : f32
    %474 = arith.addf %282, %444 : f32
    %cst_171 = arith.constant 2.000000e-01 : f32
    %475 = arith.mulf %cst_171, %474 : f32
    %476 = arith.addf %473, %475 : f32
    %c0_172 = arith.constant 0 : index
    %c0_173 = arith.constant 0 : index
    %477 = memref.load %arg3[%c0_172, %c0_173] : memref<1x1xf32, #tpu.memory_space<smem>>
    memref.store %476, %arg3[%c0_172, %c0_173] : memref<1x1xf32, #tpu.memory_space<smem>>
    return
  }
}

</mosaic_0001>

<llo_original>
// kernel: tpu_custom_call.1
$region0: #{tpu_custom_call.1}
  #allocation0 [shape = 'u32[]', space=smem, size = 0x4, offset = 0x4, fixed_abs, tag = 'smem constant byte address 0x4 - core index']
  #allocation1 [shape = 'u32[144,128]{1,0:T(1,128)}', space=vmem, size = 0x12000, scoped, tag = 'internal scratch']
  %s0 = inlined_call_operand.hbm [shape: f32[15,8,128], index: 0, kind: input, shape index: {}]
  %s1 = inlined_call_operand.vmem [shape: f32[8,16], index: 1, kind: input, shape index: {}]
  %s2 = inlined_call_operand.vmem [shape: s32[8,1], index: 2, kind: input, shape index: {}]
  %s3 = inlined_call_operand.hbm [shape: f32[1,1], index: 3, kind: output, shape index: {}]
  %s4 = sld [smem:[#allocation0]]
  $region26: #{tpu_custom_call.1} parent=0
    _
  %s6 = ssub.s32 1, %s4
  %s7 = scalar_select 0, %s6, %s4
  $region1: #{tpu_custom_call.1} parent=0
    #allocation2 [shape = 'u8[61440]{0}', space=vmem, size = 0xf000, scoped, tag = 'input window, operand 0, single buffered']
    #allocation3 [shape = 's32[1]{0}', space=sflag, size = 0x4, scoped, tag = 'scoped memory for tpu_custom_call.1']
    #allocation4 [shape = 's32[1]{0}', space=sflag, size = 0x4, scoped, tag = 'scoped memory for tpu_custom_call.1']
    #allocation5 [shape = 'u8[512]{0}', space=smem, size = 0x200, scoped, tag = 'output window, operand 0, single buffered']
    %8 = vsyncpa [#allocation3], 0
    %9 = vsyncpa [#allocation4], 0
    // Predicated region
    $region2: #{tpu_custom_call.1} parent=1 // pred_check
      _
    $region3: #{tpu_custom_call.1} parent=1 // pred_check_branch
      %11 = sbr.rel (0) target = $region5
    $region4: #{tpu_custom_call.1} parent=1 // pred_region
      %s13 = ssub.s32 1920, 1920
      %14 = vsyncadd [#allocation3], %s13
      %s15 = sshll.u32 [#allocation2], 4
      %s16 = int_to_ptr.vmem [resolvable:$true] %s15
      %21 = dma.hbm_to_vmem [thread:$0]  %s0, 1920, %s16, [#allocation3], 128, 128, 8
    $region5: #{tpu_custom_call.1} parent=1 // pred_fallthru
      _
    // Predicated region
    $region6: #{tpu_custom_call.1} parent=1 // pred_check
      _
    $region7: #{tpu_custom_call.1} parent=1 // pred_check_branch
      %23 = sbr.rel (0) target = $region9
    $region8: #{tpu_custom_call.1} parent=1 // pred_region
      _
    $region9: #{tpu_custom_call.1} parent=1 // pred_fallthru
      _
    // Predicated region
    $region10: #{tpu_custom_call.1} parent=1 // pred_check
      _
    $region11: #{tpu_custom_call.1} parent=1 // pred_check_branch
      %25 = sbr.rel (0) target = $region13
    $region12: #{tpu_custom_call.1} parent=1 // pred_region
      _
    $region13: #{tpu_custom_call.1} parent=1 // pred_fallthru
      _
    // Predicated region
    $region14: #{tpu_custom_call.1} parent=1 // pred_check
      _
    $region15: #{tpu_custom_call.1} parent=1 // pred_check_branch
      %27 = sbr.rel (0) target = $region17
    $region16: #{tpu_custom_call.1} parent=1 // pred_region
      %28 = dma.done [#allocation3], 1920
    $region17: #{tpu_custom_call.1} parent=1 // pred_fallthru
      _
    %v29 = vld [vmem:[#allocation2] sm:$0xff]
    %s30 = scalar_lea.vmem [#allocation2], 8
    %v31 = vld [vmem:[%s30] sm:$0xff]
    %s32 = scalar_lea.vmem [#allocation2], 16
    %v33 = vld [vmem:[%s32] sm:$0xff]
    %v34 = vsub.f32 %v29, %v31
    %v35 = vadd.f32 %v34, 1e-06
    %v36 = vmul.f32 %v35, %v35
    %37 = vadd.xlane.f32.xlu0 %v36
    %v38 = vpop.xlane.xlu0 %37
    %vm39 = vcmask 7168
    %v40 = vsel %vm39, %v38, 0.0
    %41 = vadd.xlane.f32.xlu0 %v40
    %v42 = vpop.xlane.xlu0 %41
    %v43 = vrot.slane %v42, 4
    %v44 = vadd.f32 %v42, %v43
    %v45 = vrot.slane %v44, 2
    %v46 = vadd.f32 %v44, %v45
    %v47 = vrot.slane %v46, 1
    %v48 = vadd.f32 %v46, %v47
    %s49 = vtos %v48
    %v50 = vrcp.pop 8.0
    %s51 = vtos %v50
    %s52 = smul.f32 %s49, %s51
    %s53 = sadd.f32 %s52, 0.0
    %v54 = vsub.f32 %v29, %v33
    %v55 = vadd.f32 %v54, 1e-06
    %v56 = vmul.f32 %v55, %v55
    %57 = vadd.xlane.f32.xlu0 %v56
    %v58 = vpop.xlane.xlu0 %57
    %v59 = vsel %vm39, %v58, 0.0
    %60 = vadd.xlane.f32.xlu0 %v59
    %v61 = vpop.xlane.xlu0 %60
    %v62 = vrot.slane %v61, 4
    %v63 = vadd.f32 %v61, %v62
    %v64 = vrot.slane %v63, 2
    %v65 = vadd.f32 %v63, %v64
    %v66 = vrot.slane %v65, 1
    %v67 = vadd.f32 %v65, %v66
    %s68 = vtos %v67
    %v69 = vrcp.pop 8.0
    %s70 = vtos %v69
    %s71 = smul.f32 %s68, %s70
    %s72 = sadd.f32 %s53, %s71
    %v73 = vsub.f32 %v31, %v33
    %v74 = vadd.f32 %v73, 1e-06
    %v75 = vmul.f32 %v74, %v74
    %76 = vadd.xlane.f32.xlu0 %v75
    %v77 = vpop.xlane.xlu0 %76
    %v78 = vsel %vm39, %v77, 0.0
    %79 = vadd.xlane.f32.xlu0 %v78
    %v80 = vpop.xlane.xlu0 %79
    %v81 = vrot.slane %v80, 4
    %v82 = vadd.f32 %v80, %v81
    %v83 = vrot.slane %v82, 2
    %v84 = vadd.f32 %v82, %v83
    %v85 = vrot.slane %v84, 1
    %v86 = vadd.f32 %v84, %v85
    %s87 = vtos %v86
    %v88 = vrcp.pop 8.0
    %s89 = vtos %v88
    %s90 = smul.f32 %s87, %s89
    %s91 = sadd.f32 %s72, %s90
    %v92 = vadd.f32 %v29, %v31
    %v93 = vadd.f32 %v92, %v33
    %v94 = vmul.f32 %v93, 0.33333334
    %95 = vadd.xlane.f32.xlu0 %v94
    %v96 = vpop.xlane.xlu0 %95
    %v97 = vrot.slane %v96, 4
    %v98 = vadd.f32 %v96, %v97
    %v99 = vrot.slane %v98, 2
    %v100 = vadd.f32 %v98, %v99
    %v101 = vrot.slane %v100, 1
    %v102 = vadd.f32 %v100, %v101
    %s103 = vtos %v102
    %v104 = vrcp.pop 1024.0
    %s105 = vtos %v104
    %s106 = smul.f32 %s103, %s105
    %v107 = vstv %s106
    %v108 = vsub.f32 %v94, %v107
    %v109 = vmul.f32 %v108, %v108
    %110 = vadd.xlane.f32.xlu0 %v109
    %v111 = vpop.xlane.xlu0 %110
    %v112 = vmax.f32 %v111, 1e-24
    %v113 = vrsqrt.pop %v112
    %v114 = vmul.f32 %v108, %v113
    %s115 = scalar_lea.vmem [#allocation2], 24
    %v116 = vld [vmem:[%s115] sm:$0xff]
    %117 = vadd.xlane.f32.xlu0 %v116
    %v118 = vpop.xlane.xlu0 %117
    %v119 = vrot.slane %v118, 4
    %v120 = vadd.f32 %v118, %v119
    %v121 = vrot.slane %v120, 2
    %v122 = vadd.f32 %v120, %v121
    %v123 = vrot.slane %v122, 1
    %v124 = vadd.f32 %v122, %v123
    %s125 = vtos %v124
    %v126 = vrcp.pop 1024.0
    %s127 = vtos %v126
    %s128 = smul.f32 %s125, %s127
    %v129 = vstv %s128
    %v130 = vsub.f32 %v116, %v129
    %v131 = vmul.f32 %v130, %v130
    %132 = vadd.xlane.f32.xlu0 %v131
    %v133 = vpop.xlane.xlu0 %132
    %v134 = vmax.f32 %v133, 1e-24
    %v135 = vrsqrt.pop %v134
    %v136 = vmul.f32 %v130, %v135
    %137 = vadd.xlane.f32.xlu0 %v114
    %v138 = vpop.xlane.xlu0 %137
    %139 = vadd.xlane.f32.xlu0 %v136
    %v140 = vpop.xlane.xlu0 %139
    %v141 = vmul.f32 %v138, %v136
    %v142 = vrot.slane %v141, 4
    %v143 = vadd.f32 %v141, %v142
    %v144 = vrot.slane %v143, 2
    %v145 = vadd.f32 %v143, %v144
    %v146 = vrot.slane %v145, 1
    %v147 = vadd.f32 %v145, %v146
    %v148 = vmul.f32 %v140, %v114
    %v149 = vrot.slane %v148, 4
    %v150 = vadd.f32 %v148, %v149
    %v151 = vrot.slane %v150, 2
    %v152 = vadd.f32 %v150, %v151
    %v153 = vrot.slane %v152, 1
    %v154 = vadd.f32 %v152, %v153
    %v155 = vmul.f32 %v147, %v154
    %vm156 = vcmask 1040384
    %v157 = vsel %vm156, %v155, 0.0
    %158 = vadd.xlane.f32.xlu0 %v157
    %v159 = vpop.xlane.xlu0 %158
    %v160 = vrot.slane %v159, 4
    %v161 = vadd.f32 %v159, %v160
    %v162 = vrot.slane %v161, 2
    %v163 = vadd.f32 %v161, %v162
    %v164 = vrot.slane %v163, 1
    %v165 = vadd.f32 %v163, %v164
    %s166 = vtos %v165
    %s167 = smul.f32 %s166, 6.1035156e-05
    %s168 = smax.f32 %s167, 0.0
    %s169 = sadd.f32 %s168, 0.0
    %s170 = scalar_lea.vmem [#allocation2], 32
    %v171 = vld [vmem:[%s170] sm:$0xff]
    %172 = vadd.xlane.f32.xlu0 %v171
    %v173 = vpop.xlane.xlu0 %172
    %v174 = vrot.slane %v173, 4
    %v175 = vadd.f32 %v173, %v174
    %v176 = vrot.slane %v175, 2
    %v177 = vadd.f32 %v175, %v176
    %v178 = vrot.slane %v177, 1
    %v179 = vadd.f32 %v177, %v178
    %s180 = vtos %v179
    %v181 = vrcp.pop 1024.0
    %s182 = vtos %v181
    %s183 = smul.f32 %s180, %s182
    %v184 = vstv %s183
    %v185 = vsub.f32 %v171, %v184
    %v186 = vmul.f32 %v185, %v185
    %187 = vadd.xlane.f32.xlu0 %v186
    %v188 = vpop.xlane.xlu0 %187
    %v189 = vmax.f32 %v188, 1e-24
    %v190 = vrsqrt.pop %v189
    %v191 = vmul.f32 %v185, %v190
    %192 = vadd.xlane.f32.xlu0 %v191
    %v193 = vpop.xlane.xlu0 %192
    %v194 = vmul.f32 %v138, %v191
    %v195 = vrot.slane %v194, 4
    %v196 = vadd.f32 %v194, %v195
    %v197 = vrot.slane %v196, 2
    %v198 = vadd.f32 %v196, %v197
    %v199 = vrot.slane %v198, 1
    %v200 = vadd.f32 %v198, %v199
    %v201 = vmul.f32 %v193, %v114
    %v202 = vrot.slane %v201, 4
    %v203 = vadd.f32 %v201, %v202
    %v204 = vrot.slane %v203, 2
    %v205 = vadd.f32 %v203, %v204
    %v206 = vrot.slane %v205, 1
    %v207 = vadd.f32 %v205, %v206
    %v208 = vmul.f32 %v200, %v207
    %v209 = vsel %vm156, %v208, 0.0
    %210 = vadd.xlane.f32.xlu0 %v209
    %v211 = vpop.xlane.xlu0 %210
    %v212 = vrot.slane %v211, 4
    %v213 = vadd.f32 %v211, %v212
    %v214 = vrot.slane %v213, 2
    %v215 = vadd.f32 %v213, %v214
    %v216 = vrot.slane %v215, 1
    %v217 = vadd.f32 %v215, %v216
    %s218 = vtos %v217
    %s219 = smul.f32 %s218, 6.1035156e-05
    %s220 = smax.f32 %s219, 0.0
    %s221 = sadd.f32 %s169, %s220
    %s222 = scalar_lea.vmem [#allocation2], 40
    %v223 = vld [vmem:[%s222] sm:$0xff]
    %224 = vadd.xlane.f32.xlu0 %v223
    %v225 = vpop.xlane.xlu0 %224
    %v226 = vrot.slane %v225, 4
    %v227 = vadd.f32 %v225, %v226
    %v228 = vrot.slane %v227, 2
    %v229 = vadd.f32 %v227, %v228
    %v230 = vrot.slane %v229, 1
    %v231 = vadd.f32 %v229, %v230
    %s232 = vtos %v231
    %v233 = vrcp.pop 1024.0
    %s234 = vtos %v233
    %s235 = smul.f32 %s232, %s234
    %v236 = vstv %s235
    %v237 = vsub.f32 %v223, %v236
    %v238 = vmul.f32 %v237, %v237
    %239 = vadd.xlane.f32.xlu0 %v238
    %v240 = vpop.xlane.xlu0 %239
    %v241 = vmax.f32 %v240, 1e-24
    %v242 = vrsqrt.pop %v241
    %v243 = vmul.f32 %v237, %v242
    %244 = vadd.xlane.f32.xlu0 %v243
    %v245 = vpop.xlane.xlu0 %244
    %v246 = vmul.f32 %v138, %v243
    %v247 = vrot.slane %v246, 4
    %v248 = vadd.f32 %v246, %v247
    %v249 = vrot.slane %v248, 2
    %v250 = vadd.f32 %v248, %v249
    %v251 = vrot.slane %v250, 1
    %v252 = vadd.f32 %v250, %v251
    %v253 = vmul.f32 %v245, %v114
    %v254 = vrot.slane %v253, 4
    %v255 = vadd.f32 %v253, %v254
    %v256 = vrot.slane %v255, 2
    %v257 = vadd.f32 %v255, %v256
    %v258 = vrot.slane %v257, 1
    %v259 = vadd.f32 %v257, %v258
    %v260 = vmul.f32 %v252, %v259
    %v261 = vsel %vm156, %v260, 0.0
    %262 = vadd.xlane.f32.xlu0 %v261
    %v263 = vpop.xlane.xlu0 %262
    %v264 = vrot.slane %v263, 4
    %v265 = vadd.f32 %v263, %v264
    %v266 = vrot.slane %v265, 2
    %v267 = vadd.f32 %v265, %v266
    %v268 = vrot.slane %v267, 1
    %v269 = vadd.f32 %v267, %v268
    %s270 = vtos %v269
    %s271 = smul.f32 %s270, 6.1035156e-05
    %s272 = smax.f32 %s271, 0.0
    %s273 = sadd.f32 %s221, %s272
    %s274 = scalar_lea.vmem [#allocation2], 48
    %v275 = vld [vmem:[%s274] sm:$0xff]
    %276 = vadd.xlane.f32.xlu0 %v275
    %v277 = vpop.xlane.xlu0 %276
    %v278 = vrot.slane %v277, 4
    %v279 = vadd.f32 %v277, %v278
    %v280 = vrot.slane %v279, 2
    %v281 = vadd.f32 %v279, %v280
    %v282 = vrot.slane %v281, 1
    %v283 = vadd.f32 %v281, %v282
    %s284 = vtos %v283
    %v285 = vrcp.pop 1024.0
    %s286 = vtos %v285
    %s287 = smul.f32 %s284, %s286
    %v288 = vstv %s287
    %v289 = vsub.f32 %v275, %v288
    %v290 = vmul.f32 %v289, %v289
    %291 = vadd.xlane.f32.xlu0 %v290
    %v292 = vpop.xlane.xlu0 %291
    %v293 = vmax.f32 %v292, 1e-24
    %v294 = vrsqrt.pop %v293
    %v295 = vmul.f32 %v289, %v294
    %296 = vadd.xlane.f32.xlu0 %v295
    %v297 = vpop.xlane.xlu0 %296
    %v298 = vmul.f32 %v138, %v295
    %v299 = vrot.slane %v298, 4
    %v300 = vadd.f32 %v298, %v299
    %v301 = vrot.slane %v300, 2
    %v302 = vadd.f32 %v300, %v301
    %v303 = vrot.slane %v302, 1
    %v304 = vadd.f32 %v302, %v303
    %v305 = vmul.f32 %v297, %v114
    %v306 = vrot.slane %v305, 4
    %v307 = vadd.f32 %v305, %v306
    %v308 = vrot.slane %v307, 2
    %v309 = vadd.f32 %v307, %v308
    %v310 = vrot.slane %v309, 1
    %v311 = vadd.f32 %v309, %v310
    %v312 = vmul.f32 %v304, %v311
    %v313 = vsel %vm156, %v312, 0.0
    %314 = vadd.xlane.f32.xlu0 %v313
    %v315 = vpop.xlane.xlu0 %314
    %v316 = vrot.slane %v315, 4
    %v317 = vadd.f32 %v315, %v316
    %v318 = vrot.slane %v317, 2
    %v319 = vadd.f32 %v317, %v318
    %v320 = vrot.slane %v319, 1
    %v321 = vadd.f32 %v319, %v320
    %s322 = vtos %v321
    %s323 = smul.f32 %s322, 6.1035156e-05
    %s324 = smax.f32 %s323, 0.0
    %s325 = sadd.f32 %s273, %s324
    %s326 = scalar_lea.vmem [#allocation2], 56
    %v327 = vld [vmem:[%s326] sm:$0xff]
    %328 = vadd.xlane.f32.xlu0 %v327
    %v329 = vpop.xlane.xlu0 %328
    %v330 = vrot.slane %v329, 4
    %v331 = vadd.f32 %v329, %v330
    %v332 = vrot.slane %v331, 2
    %v333 = vadd.f32 %v331, %v332
    %v334 = vrot.slane %v333, 1
    %v335 = vadd.f32 %v333, %v334
    %s336 = vtos %v335
    %v337 = vrcp.pop 1024.0
    %s338 = vtos %v337
    %s339 = smul.f32 %s336, %s338
    %v340 = vstv %s339
    %v341 = vsub.f32 %v327, %v340
    %v342 = vmul.f32 %v341, %v341
    %343 = vadd.xlane.f32.xlu0 %v342
    %v344 = vpop.xlane.xlu0 %343
    %v345 = vmax.f32 %v344, 1e-24
    %v346 = vrsqrt.pop %v345
    %v347 = vmul.f32 %v341, %v346
    %348 = vadd.xlane.f32.xlu0 %v347
    %v349 = vpop.xlane.xlu0 %348
    %v350 = vmul.f32 %v138, %v347
    %v351 = vrot.slane %v350, 4
    %v352 = vadd.f32 %v350, %v351
    %v353 = vrot.slane %v352, 2
    %v354 = vadd.f32 %v352, %v353
    %v355 = vrot.slane %v354, 1
    %v356 = vadd.f32 %v354, %v355
    %v357 = vmul.f32 %v349, %v114
    %v358 = vrot.slane %v357, 4
    %v359 = vadd.f32 %v357, %v358
    %v360 = vrot.slane %v359, 2
    %v361 = vadd.f32 %v359, %v360
    %v362 = vrot.slane %v361, 1
    %v363 = vadd.f32 %v361, %v362
    %v364 = vmul.f32 %v356, %v363
    %v365 = vsel %vm156, %v364, 0.0
    %366 = vadd.xlane.f32.xlu0 %v365
    %v367 = vpop.xlane.xlu0 %366
    %v368 = vrot.slane %v367, 4
    %v369 = vadd.f32 %v367, %v368
    %v370 = vrot.slane %v369, 2
    %v371 = vadd.f32 %v369, %v370
    %v372 = vrot.slane %v371, 1
    %v373 = vadd.f32 %v371, %v372
    %s374 = vtos %v373
    %s375 = smul.f32 %s374, 6.1035156e-05
    %s376 = smax.f32 %s375, 0.0
    %s377 = sadd.f32 %s325, %s376
    %s378 = scalar_lea.vmem [#allocation2], 64
    %v379 = vld [vmem:[%s378] sm:$0xff]
    %380 = vadd.xlane.f32.xlu0 %v379
    %v381 = vpop.xlane.xlu0 %380
    %v382 = vrot.slane %v381, 4
    %v383 = vadd.f32 %v381, %v382
    %v384 = vrot.slane %v383, 2
    %v385 = vadd.f32 %v383, %v384
    %v386 = vrot.slane %v385, 1
    %v387 = vadd.f32 %v385, %v386
    %s388 = vtos %v387
    %v389 = vrcp.pop 1024.0
    %s390 = vtos %v389
    %s391 = smul.f32 %s388, %s390
    %v392 = vstv %s391
    %v393 = vsub.f32 %v379, %v392
    %v394 = vmul.f32 %v393, %v393
    %395 = vadd.xlane.f32.xlu0 %v394
    %v396 = vpop.xlane.xlu0 %395
    %v397 = vmax.f32 %v396, 1e-24
    %v398 = vrsqrt.pop %v397
    %v399 = vmul.f32 %v393, %v398
    %400 = vadd.xlane.f32.xlu0 %v399
    %v401 = vpop.xlane.xlu0 %400
    %v402 = vmul.f32 %v138, %v399
    %v403 = vrot.slane %v402, 4
    %v404 = vadd.f32 %v402, %v403
    %v405 = vrot.slane %v404, 2
    %v406 = vadd.f32 %v404, %v405
    %v407 = vrot.slane %v406, 1
    %v408 = vadd.f32 %v406, %v407
    %v409 = vmul.f32 %v401, %v114
    %v410 = vrot.slane %v409, 4
    %v411 = vadd.f32 %v409, %v410
    %v412 = vrot.slane %v411, 2
    %v413 = vadd.f32 %v411, %v412
    %v414 = vrot.slane %v413, 1
    %v415 = vadd.f32 %v413, %v414
    %v416 = vmul.f32 %v408, %v415
    %v417 = vsel %vm156, %v416, 0.0
    %418 = vadd.xlane.f32.xlu0 %v417
    %v419 = vpop.xlane.xlu0 %418
    %v420 = vrot.slane %v419, 4
    %v421 = vadd.f32 %v419, %v420
    %v422 = vrot.slane %v421, 2
    %v423 = vadd.f32 %v421, %v422
    %v424 = vrot.slane %v423, 1
    %v425 = vadd.f32 %v423, %v424
    %s426 = vtos %v425
    %s427 = smul.f32 %s426, 6.1035156e-05
    %s428 = smax.f32 %s427, 0.0
    %s429 = sadd.f32 %s377, %s428
    %s430 = scalar_lea.vmem [#allocation2], 72
    %v431 = vld [vmem:[%s430] sm:$0xff]
    %432 = vadd.xlane.f32.xlu0 %v431
    %v433 = vpop.xlane.xlu0 %432
    %v434 = vrot.slane %v433, 4
    %v435 = vadd.f32 %v433, %v434
    %v436 = vrot.slane %v435, 2
    %v437 = vadd.f32 %v435, %v436
    %v438 = vrot.slane %v437, 1
    %v439 = vadd.f32 %v437, %v438
    %s440 = vtos %v439
    %v441 = vrcp.pop 1024.0
    %s442 = vtos %v441
    %s443 = smul.f32 %s440, %s442
    %v444 = vstv %s443
    %v445 = vsub.f32 %v431, %v444
    %v446 = vmul.f32 %v445, %v445
    %447 = vadd.xlane.f32.xlu0 %v446
    %v448 = vpop.xlane.xlu0 %447
    %v449 = vmax.f32 %v448, 1e-24
    %v450 = vrsqrt.pop %v449
    %v451 = vmul.f32 %v445, %v450
    %s452 = scalar_lea.vmem [#allocation2], 96
    %v453 = vld [vmem:[%s452] sm:$0xff]
    %454 = vadd.xlane.f32.xlu0 %v453
    %v455 = vpop.xlane.xlu0 %454
    %v456 = vrot.slane %v455, 4
    %v457 = vadd.f32 %v455, %v456
    %v458 = vrot.slane %v457, 2
    %v459 = vadd.f32 %v457, %v458
    %v460 = vrot.slane %v459, 1
    %v461 = vadd.f32 %v459, %v460
    %s462 = vtos %v461
    %v463 = vrcp.pop 1024.0
    %s464 = vtos %v463
    %s465 = smul.f32 %s462, %s464
    %v466 = vstv %s465
    %v467 = vsub.f32 %v453, %v466
    %v468 = vmul.f32 %v467, %v467
    %469 = vadd.xlane.f32.xlu0 %v468
    %v470 = vpop.xlane.xlu0 %469
    %v471 = vmax.f32 %v470, 1e-24
    %v472 = vrsqrt.pop %v471
    %v473 = vmul.f32 %v467, %v472
    %474 = vadd.xlane.f32.xlu0 %v451
    %v475 = vpop.xlane.xlu0 %474
    %476 = vadd.xlane.f32.xlu0 %v473
    %v477 = vpop.xlane.xlu0 %476
    %v478 = vmul.f32 %v475, %v473
    %v479 = vrot.slane %v478, 4
    %v480 = vadd.f32 %v478, %v479
    %v481 = vrot.slane %v480, 2
    %v482 = vadd.f32 %v480, %v481
    %v483 = vrot.slane %v482, 1
    %v484 = vadd.f32 %v482, %v483
    %v485 = vmul.f32 %v477, %v451
    %v486 = vrot.slane %v485, 4
    %v487 = vadd.f32 %v485, %v486
    %v488 = vrot.slane %v487, 2
    %v489 = vadd.f32 %v487, %v488
    %v490 = vrot.slane %v489, 1
    %v491 = vadd.f32 %v489, %v490
    %v492 = vmul.f32 %v484, %v491
    %v493 = vsel %vm156, %v492, 0.0
    %494 = vadd.xlane.f32.xlu0 %v493
    %v495 = vpop.xlane.xlu0 %494
    %v496 = vrot.slane %v495, 4
    %v497 = vadd.f32 %v495, %v496
    %v498 = vrot.slane %v497, 2
    %v499 = vadd.f32 %v497, %v498
    %v500 = vrot.slane %v499, 1
    %v501 = vadd.f32 %v499, %v500
    %s502 = vtos %v501
    %s503 = smul.f32 %s502, 6.1035156e-05
    %s504 = smax.f32 %s503, 0.0
    %s505 = sadd.f32 %s504, 0.0
    %s506 = scalar_lea.vmem [#allocation2], 80
    %v507 = vld [vmem:[%s506] sm:$0xff]
    %508 = vadd.xlane.f32.xlu0 %v507
    %v509 = vpop.xlane.xlu0 %508
    %v510 = vrot.slane %v509, 4
    %v511 = vadd.f32 %v509, %v510
    %v512 = vrot.slane %v511, 2
    %v513 = vadd.f32 %v511, %v512
    %v514 = vrot.slane %v513, 1
    %v515 = vadd.f32 %v513, %v514
    %s516 = vtos %v515
    %v517 = vrcp.pop 1024.0
    %s518 = vtos %v517
    %s519 = smul.f32 %s516, %s518
    %v520 = vstv %s519
    %v521 = vsub.f32 %v507, %v520
    %v522 = vmul.f32 %v521, %v521
    %523 = vadd.xlane.f32.xlu0 %v522
    %v524 = vpop.xlane.xlu0 %523
    %v525 = vmax.f32 %v524, 1e-24
    %v526 = vrsqrt.pop %v525
    %v527 = vmul.f32 %v521, %v526
    %s528 = scalar_lea.vmem [#allocation2], 104
    %v529 = vld [vmem:[%s528] sm:$0xff]
    %530 = vadd.xlane.f32.xlu0 %v529
    %v531 = vpop.xlane.xlu0 %530
    %v532 = vrot.slane %v531, 4
    %v533 = vadd.f32 %v531, %v532
    %v534 = vrot.slane %v533, 2
    %v535 = vadd.f32 %v533, %v534
    %v536 = vrot.slane %v535, 1
    %v537 = vadd.f32 %v535, %v536
    %s538 = vtos %v537
    %v539 = vrcp.pop 1024.0
    %s540 = vtos %v539
    %s541 = smul.f32 %s538, %s540
    %v542 = vstv %s541
    %v543 = vsub.f32 %v529, %v542
    %v544 = vmul.f32 %v543, %v543
    %545 = vadd.xlane.f32.xlu0 %v544
    %v546 = vpop.xlane.xlu0 %545
    %v547 = vmax.f32 %v546, 1e-24
    %v548 = vrsqrt.pop %v547
    %v549 = vmul.f32 %v543, %v548
    %550 = vadd.xlane.f32.xlu0 %v527
    %v551 = vpop.xlane.xlu0 %550
    %552 = vadd.xlane.f32.xlu0 %v549
    %v553 = vpop.xlane.xlu0 %552
    %v554 = vmul.f32 %v551, %v549
    %v555 = vrot.slane %v554, 4
    %v556 = vadd.f32 %v554, %v555
    %v557 = vrot.slane %v556, 2
    %v558 = vadd.f32 %v556, %v557
    %v559 = vrot.slane %v558, 1
    %v560 = vadd.f32 %v558, %v559
    %v561 = vmul.f32 %v553, %v527
    %v562 = vrot.slane %v561, 4
    %v563 = vadd.f32 %v561, %v562
    %v564 = vrot.slane %v563, 2
    %v565 = vadd.f32 %v563, %v564
    %v566 = vrot.slane %v565, 1
    %v567 = vadd.f32 %v565, %v566
    %v568 = vmul.f32 %v560, %v567
    %v569 = vsel %vm156, %v568, 0.0
    %570 = vadd.xlane.f32.xlu0 %v569
    %v571 = vpop.xlane.xlu0 %570
    %v572 = vrot.slane %v571, 4
    %v573 = vadd.f32 %v571, %v572
    %v574 = vrot.slane %v573, 2
    %v575 = vadd.f32 %v573, %v574
    %v576 = vrot.slane %v575, 1
    %v577 = vadd.f32 %v575, %v576
    %s578 = vtos %v577
    %s579 = smul.f32 %s578, 6.1035156e-05
    %s580 = smax.f32 %s579, 0.0
    %s581 = sadd.f32 %s505, %s580
    %s582 = scalar_lea.vmem [#allocation2], 88
    %v583 = vld [vmem:[%s582] sm:$0xff]
    %584 = vadd.xlane.f32.xlu0 %v583
    %v585 = vpop.xlane.xlu0 %584
    %v586 = vrot.slane %v585, 4
    %v587 = vadd.f32 %v585, %v586
    %v588 = vrot.slane %v587, 2
    %v589 = vadd.f32 %v587, %v588
    %v590 = vrot.slane %v589, 1
    %v591 = vadd.f32 %v589, %v590
    %s592 = vtos %v591
    %v593 = vrcp.pop 1024.0
    %s594 = vtos %v593
    %s595 = smul.f32 %s592, %s594
    %v596 = vstv %s595
    %v597 = vsub.f32 %v583, %v596
    %v598 = vmul.f32 %v597, %v597
    %599 = vadd.xlane.f32.xlu0 %v598
    %v600 = vpop.xlane.xlu0 %599
    %v601 = vmax.f32 %v600, 1e-24
    %v602 = vrsqrt.pop %v601
    %v603 = vmul.f32 %v597, %v602
    %s604 = scalar_lea.vmem [#allocation2], 112
    %v605 = vld [vmem:[%s604] sm:$0xff]
    %606 = vadd.xlane.f32.xlu0 %v605
    %v607 = vpop.xlane.xlu0 %606
    %v608 = vrot.slane %v607, 4
    %v609 = vadd.f32 %v607, %v608
    %v610 = vrot.slane %v609, 2
    %v611 = vadd.f32 %v609, %v610
    %v612 = vrot.slane %v611, 1
    %v613 = vadd.f32 %v611, %v612
    %s614 = vtos %v613
    %v615 = vrcp.pop 1024.0
    %s616 = vtos %v615
    %s617 = smul.f32 %s614, %s616
    %v618 = vstv %s617
    %v619 = vsub.f32 %v605, %v618
    %v620 = vmul.f32 %v619, %v619
    %621 = vadd.xlane.f32.xlu0 %v620
    %v622 = vpop.xlane.xlu0 %621
    %v623 = vmax.f32 %v622, 1e-24
    %v624 = vrsqrt.pop %v623
    %v625 = vmul.f32 %v619, %v624
    %626 = vadd.xlane.f32.xlu0 %v603
    %v627 = vpop.xlane.xlu0 %626
    %628 = vadd.xlane.f32.xlu0 %v625
    %v629 = vpop.xlane.xlu0 %628
    %v630 = vmul.f32 %v627, %v625
    %v631 = vrot.slane %v630, 4
    %v632 = vadd.f32 %v630, %v631
    %v633 = vrot.slane %v632, 2
    %v634 = vadd.f32 %v632, %v633
    %v635 = vrot.slane %v634, 1
    %v636 = vadd.f32 %v634, %v635
    %v637 = vmul.f32 %v629, %v603
    %v638 = vrot.slane %v637, 4
    %v639 = vadd.f32 %v637, %v638
    %v640 = vrot.slane %v639, 2
    %v641 = vadd.f32 %v639, %v640
    %v642 = vrot.slane %v641, 1
    %v643 = vadd.f32 %v641, %v642
    %v644 = vmul.f32 %v636, %v643
    %v645 = vsel %vm156, %v644, 0.0
    %646 = vadd.xlane.f32.xlu0 %v645
    %v647 = vpop.xlane.xlu0 %646
    %v648 = vrot.slane %v647, 4
    %v649 = vadd.f32 %v647, %v648
    %v650 = vrot.slane %v649, 2
    %v651 = vadd.f32 %v649, %v650
    %v652 = vrot.slane %v651, 1
    %v653 = vadd.f32 %v651, %v652
    %s654 = vtos %v653
    %s655 = smul.f32 %s654, 6.1035156e-05
    %s656 = smax.f32 %s655, 0.0
    %s657 = sadd.f32 %s581, %s656
    %v658 = vld [vmem:[%s1] sm:$0xff]
    %v659 = vld [vmem:[%s2] sm:$0xff]
    %vm660 = vcmask 130048
    %v661 = vsel %vm660, %v658, -inf
    %662 = vmax.xlane.f32.xlu0 %v661
    %v663 = vpop.xlane.xlu0 %662
    %v664 = vsub.f32 %v658, %v663
    %v665 = vmul.f32 %v664, 1.442695
    %v666 = vpow.pop %v665
    %v667 = vsel %vm660, %v666, 0.0
    %668 = vadd.xlane.f32.xlu0 %v667
    %v669 = vpop.xlane.xlu0 %668
    %v670 = vlog2.pop %v669
    %v671 = vmul.f32 %v670, 0.6931472
    %v672 = vsub.f32 %v664, %v671
    %v673 = vlaneseq
    %v674 = vand.u32 %v673, 127
    %675 = vset.pattern.permute.xlu0 0
    %676 = vperm.xlu0 %675, %v659
    %v677 = vpop.permute.xlu0 %676
    %vm678 = vcmp.eq.s32.totalorder %v674, %v677
    %v679 = vsel %vm678, 1, 0
    %v680 = vcvt.s32.f32 %v679
    %v681 = vmul.f32 %v672, %v680
    %v682 = vsel %vm660, %v681, 0.0
    %683 = vadd.xlane.f32.xlu0 %v682
    %v684 = vpop.xlane.xlu0 %683
    %v685 = vsub.f32 0.0, %v684
    %v686 = vsel %vm39, %v685, 0.0
    %687 = vadd.xlane.f32.xlu0 %v686
    %v688 = vpop.xlane.xlu0 %687
    %v689 = vrot.slane %v688, 4
    %v690 = vadd.f32 %v688, %v689
    %v691 = vrot.slane %v690, 2
    %v692 = vadd.f32 %v690, %v691
    %v693 = vrot.slane %v692, 1
    %v694 = vadd.f32 %v692, %v693
    %s695 = vtos %v694
    %v696 = vrcp.pop 8.0
    %s697 = vtos %v696
    %s698 = smul.f32 %s695, %s697
    %s699 = smul.f32 %s91, 0.1
    %s700 = sadd.f32 %s698, %s699
    %s701 = sadd.f32 %s429, %s657
    %s702 = smul.f32 %s701, 0.2
    %s703 = sadd.f32 %s700, %s702
    %s704 = scalar_lea.smem [#allocation5], 0
    %705 = sst [smem:[%s704]] %s703
    // Predicated region
    $region18: #{tpu_custom_call.1} parent=1 // pred_check
      _
    $region19: #{tpu_custom_call.1} parent=1 // pred_check_branch
      %707 = sbr.rel (0) target = $region21
    $region20: #{tpu_custom_call.1} parent=1 // pred_region
      %s709 = ssub.s32 16, 16
      %710 = vsyncadd [#allocation4], %s709
      %713 = dma.smem_to_hbm [#allocation5], 16, %s3, [#allocation4]
    $region21: #{tpu_custom_call.1} parent=1 // pred_fallthru
      _
    // Predicated region
    $region22: #{tpu_custom_call.1} parent=1 // pred_check
      _
    $region23: #{tpu_custom_call.1} parent=1 // pred_check_branch
      %715 = sbr.rel (0) target = $region25
    $region24: #{tpu_custom_call.1} parent=1 // pred_region
      %716 = dma.done [#allocation4], 16
    $region25: #{tpu_custom_call.1} parent=1 // pred_fallthru
      _
    %717 = sfence
    %718 = vsyncpa [#allocation3], 1
    %719 = vsyncpa [#allocation4], 1

</llo_original>
